<compile_context>
chip_gen: v7x
topology: tpu7x:2x2x1
jax: 0.10.0
libtpu: 0.0.40
codegen_flags: <defaults>
</compile_context>

<pallas_src>
import functools

import jax
import jax.numpy as jnp
from jax.experimental import pallas as pl
from jax.experimental.pallas import tpu as pltpu


# Flat kron-DFT only wins while the (HW, HW) contraction is deeper than the
# MXU (256 wide on v6e/v7x): use it for probes up to 16x16 only.
_FLAT_DFT_MAX_ELEMS = 256
_MAX_B_TILE = 512


def _round_up(x, n):
    return ((x + n - 1) // n) * n


def _dft_matrix(n):
    """Real/imag parts of the unnormalized forward DFT matrix exp(-2*pi*i*j*k/n)."""
    k = jnp.arange(n, dtype=jnp.float32)
    phase = (-2.0 * jnp.pi / n) * (k[:, None] * k[None, :])
    return jnp.cos(phase), jnp.sin(phase)


def _gen_budgets():
    """(per-tile row budget, vmem_limit cap) — TPU-generation aware."""
    try:
        vmem = int(pltpu.get_tpu_info().vmem_capacity_bytes)
    except Exception:
        vmem = 64 << 20                      # conservative default if query fails
    if vmem <= (96 << 20):                   # v7x-class TensorCore: 64 MiB VMEM
        return 14 << 20, 48 << 20
    return 64 << 20, 96 << 20                # v5e / v6e: 128 MiB VMEM


def _vmem_limit(estimate_bytes, cap):
    # Always explicit: the default scoped VMEM limit is only 16 MiB on v5e.
    return int(min(cap, max(32 << 20, estimate_bytes * 5 // 4 + (4 << 20))))


def _choose_b_tile(batch, bytes_per_row, row_budget):
    """Largest 8-aligned batch tile that fits the row budget (batch is padded)."""
    b_pad8 = _round_up(batch, 8)
    cap = max(8, (row_budget // max(bytes_per_row, 1)) // 8 * 8)
    bt = min(b_pad8, cap, _MAX_B_TILE)
    # Prefer >= 2 grid steps (v7x megacore sharding + DMA/compute overlap)
    # whenever a clean 8-aligned split exists.
    if bt >= b_pad8 and b_pad8 >= 16 and (b_pad8 // 2) % 8 == 0:
        bt = b_pad8 // 2
    return bt


# ---------------------------------------------------------------------------
# Kernels
# ---------------------------------------------------------------------------
def _forward_kernel_flat(obj_re_ref, obj_im_ref, pr_re_ref, pr_im_ref,
                         f_ref, out_ref, *, n_modes, use_gauss):
    """Tiny probes: flattened 2-D DFT, probe modes folded into the matmul M dim."""
    o_r = obj_re_ref[...]                        # (bt, HW) f32
    o_i = obj_im_ref[...]
    bt = o_r.shape[0]
    f_r = f_ref[0]                               # (HW, HW) MXU dtype
    f_i = f_ref[1]
    cdt = f_r.dtype

    prr = pr_re_ref[...]                         # (M, HW), fetched once
    pri = pr_im_ref[...]

    # Exit-wave slab for all modes: (M*bt, HW) — one set of big matmuls.
    e_r_parts, e_i_parts = [], []
    for m in range(n_modes):                     # static; M small, VPU only
        p_r = prr[m:m + 1, :]                    # (1, HW) sublane broadcast
        p_i = pri[m:m + 1, :]
        e_r_parts.append(p_r * o_r - p_i * o_i)
        e_i_parts.append(p_r * o_i + p_i * o_r)
    if n_modes > 1:
        e_r = jnp.concatenate(e_r_parts, axis=0)
        e_i = jnp.concatenate(e_i_parts, axis=0)
    else:
        e_r, e_i = e_r_parts[0], e_i_parts[0]

    if use_gauss:                                # f32: 3-multiply complex matmul
        f_s = f_ref[2]
        e_s = e_r + e_i
        t1 = jnp.dot(e_r.astype(cdt), f_r, preferred_element_type=jnp.float32)
        t2 = jnp.dot(e_i.astype(cdt), f_i, preferred_element_type=jnp.float32)
        t3 = jnp.dot(e_s.astype(cdt), f_s, preferred_element_type=jnp.float32)
        psi_r = t1 - t2
        psi_i = t3 - t1 - t2
    else:                                        # bf16: plain 4-multiply form
        ar = e_r.astype(cdt)
        ai = e_i.astype(cdt)
        psi_r = (jnp.dot(ar, f_r, preferred_element_type=jnp.float32)
                 - jnp.dot(ai, f_i, preferred_element_type=jnp.float32))
        psi_i = (jnp.dot(ar, f_i, preferred_element_type=jnp.float32)
                 + jnp.dot(ai, f_r, preferred_element_type=jnp.float32))

    inten = psi_r * psi_r + psi_i * psi_i        # (M*bt, HW)
    acc = inten[0:bt, :]
    for m in range(1, n_modes):                  # M-1 cheap VPU adds
        acc = acc + inten[m * bt:(m + 1) * bt, :]
    out_ref[...] = acc


def _forward_kernel_2pass(obj_re_ref, obj_im_ref, pr_re_ref, pr_im_ref,
                          fh_ref, fw_ref, out_ref, *, n_modes, use_gauss):
    """Larger probes: two-pass DFT as two big reshaped matmuls per mode."""
    o_r = obj_re_ref[...]                        # (bt, H, W)
    o_i = obj_im_ref[...]
    bt, hh, ww = o_r.shape
    fw_r = fw_ref[0]                             # (W, W)
    fw_i = fw_ref[1]
    fh_r = fh_ref[0]                             # (H, H)
    fh_i = fh_ref[1]
    cdt = fw_r.dtype
    if use_gauss:
        fw_s = fw_ref[2]
        fh_s = fh_ref[2]

    def one_mode(p_r, p_i):
        # Exit wave (complex elementwise, VPU).
        e_r = p_r * o_r - p_i * o_i              # (bt, H, W)
        e_i = p_r * o_i + p_i * o_r
        e_r2 = e_r.reshape(bt * hh, ww).astype(cdt)
        e_i2 = e_i.reshape(bt * hh, ww).astype(cdt)
        # Pass 1: contract W from the right (DFT matrix is symmetric).
        if use_gauss:
            e_s2 = e_r2 + e_i2
            t1 = jnp.dot(e_r2, fw_r, preferred_element_type=jnp.float32)
            t2 = jnp.dot(e_i2, fw_i, preferred_element_type=jnp.float32)
            t3 = jnp.dot(e_s2, fw_s, preferred_element_type=jnp.float32)
            a_r = t1 - t2
            a_i = t3 - t1 - t2
        else:
            a_r = (jnp.dot(e_r2, fw_r, preferred_element_type=jnp.float32)
                   - jnp.dot(e_i2, fw_i, preferred_element_type=jnp.float32))
            a_i = (jnp.dot(e_r2, fw_i, preferred_element_type=jnp.float32)
                   + jnp.dot(e_i2, fw_r, preferred_element_type=jnp.float32))
        # Transpose once per mode (XLU) so pass 2 is also a right-matmul.
        a_rt = jnp.swapaxes(a_r.reshape(bt, hh, ww), -1, -2).reshape(bt * ww, hh).astype(cdt)
        a_it = jnp.swapaxes(a_i.reshape(bt, hh, ww), -1, -2).reshape(bt * ww, hh).astype(cdt)
        # Pass 2: contract H from the right -> Psi^T (transposed far field).
        if use_gauss:
            a_st = a_rt + a_it
            s1 = jnp.dot(a_rt, fh_r, preferred_element_type=jnp.float32)
            s2 = jnp.dot(a_it, fh_i, preferred_element_type=jnp.float32)
            s3 = jnp.dot(a_st, fh_s, preferred_element_type=jnp.float32)
            pt_r = s1 - s2
            pt_i = s3 - s1 - s2
        else:
            pt_r = (jnp.dot(a_rt, fh_r, preferred_element_type=jnp.float32)
                    - jnp.dot(a_it, fh_i, preferred_element_type=jnp.float32))
            pt_i = (jnp.dot(a_rt, fh_i, preferred_element_type=jnp.float32)
                    + jnp.dot(a_it, fh_r, preferred_element_type=jnp.float32))
        return pt_r * pt_r + pt_i * pt_i         # (bt*W, H): |Psi|^2, transposed

    if n_modes <= 4:
        acc = None
        for m in range(n_modes):                 # static unroll: small M
            inten = one_mode(pr_re_ref[m][None], pr_im_ref[m][None])
            acc = inten if acc is None else acc + inten
    else:
        # fori_loop bounds live ranges when there are many probe modes.
        def body(m, carry):
            return carry + one_mode(pr_re_ref[m][None], pr_im_ref[m][None])
        acc = jax.lax.fori_loop(0, n_modes, body,
                                jnp.zeros((bt * ww, hh), jnp.float32))

    # Un-transpose once per tile and write the output block once.
    out_ref[...] = jnp.swapaxes(acc.reshape(bt, ww, hh), -1, -2)


# ---------------------------------------------------------------------------
# Wrapper
# ---------------------------------------------------------------------------
def ptycho_forward(obj_patches, probe, *, mxu_dtype=jnp.float32, b_tile=None):
    """obj_patches: complex64 (B, H, W); probe: complex64 (M, H, W).
    Returns float32 (B, H, W) detector intensities sum_m |FFT2(probe_m * obj_b)|^2.

    mxu_dtype=jnp.bfloat16 is an opt-in for v6e/v7x (dot inputs only, f32 accum,
    4-multiply complex product); default float32 uses the Gauss 3-multiply form.
    """
    B, H, W = obj_patches.shape
    M = probe.shape[0]
    HW = H * W
    use_gauss = jnp.dtype(mxu_dtype) == jnp.dtype(jnp.float32)
    n_f = 3 if use_gauss else 2
    itemsize = jnp.dtype(mxu_dtype).itemsize
    row_budget, limit_cap = _gen_budgets()

    o_re = jnp.real(obj_patches).astype(jnp.float32)
    o_im = jnp.imag(obj_patches).astype(jnp.float32)
    p_re = jnp.real(probe).astype(jnp.float32)
    p_im = jnp.imag(probe).astype(jnp.float32)

    fhr, fhi = _dft_matrix(H)
    if W == H:
        fwr, fwi = fhr, fhi
    else:
        fwr, fwi = _dft_matrix(W)

    def _inv_spec(shape, imap, buffered):
        # Grid-invariant operand: single-buffer it (fetched once, never refetched).
        if buffered:
            return pl.BlockSpec(shape, imap, pipeline_mode=pl.Buffered(1))
        return pl.BlockSpec(shape, imap)

    if HW <= _FLAT_DFT_MAX_ELEMS:
        # ---- tiny probes: flattened 2-D DFT = one lane-dense matmul --------
        f2 = jnp.kron(fhr + 1j * fhi, fwr + 1j * fwi)      # Psi_flat = psi_flat @ f2
        planes = [jnp.real(f2), jnp.imag(f2)]
        if use_gauss:
            planes.append(jnp.real(f2) + jnp.imag(f2))
        f_stack = jnp.stack(planes).astype(mxu_dtype)       # (n_f, HW, HW)

        o_re2 = o_re.reshape(B, HW)
        o_im2 = o_im.reshape(B, HW)
        p_re2 = p_re.reshape(M, HW)
        p_im2 = p_im.reshape(M, HW)

        inv_bytes = n_f * HW * HW * itemsize + 2 * M * HW * 4
        bytes_per_row = HW * 4 * (8 + 9 * M)                 # pipelined I/O + mode slab
        bt = b_tile or _choose_b_tile(B, bytes_per_row,
                                      max(row_budget - inv_bytes, 4 << 20))
        bt = _round_up(bt, 8)
        b_pad = _round_up(B, bt)
        if b_pad != B:
            o_re2 = jnp.pad(o_re2, ((0, b_pad - B), (0, 0)))
            o_im2 = jnp.pad(o_im2, ((0, b_pad - B), (0, 0)))
        grid = (b_pad // bt,)
        est = bt * bytes_per_row + 2 * inv_bytes
        kern = functools.partial(_forward_kernel_flat, n_modes=M, use_gauss=use_gauss)

        def run(buffered):
            in_specs = [
                pl.BlockSpec((bt, HW), lambda b: (b, 0)),
                pl.BlockSpec((bt, HW), lambda b: (b, 0)),
                _inv_spec((M, HW), lambda b: (0, 0), buffered),
                _inv_spec((M, HW), lambda b: (0, 0), buffered),
                _inv_spec((n_f, HW, HW), lambda b: (0, 0, 0), buffered),
            ]
            out_spec = pl.BlockSpec((bt, HW), lambda b: (b, 0))
            return pl.pallas_call(
                kern,
                out_shape=jax.ShapeDtypeStruct((b_pad, HW), jnp.float32),
                grid_spec=pltpu.PrefetchScalarGridSpec(
                    num_scalar_prefetch=0, grid=grid,
                    in_specs=in_specs, out_specs=out_spec),
                compiler_params=pltpu.CompilerParams(
                    dimension_semantics=("parallel",),
                    vmem_limit_bytes=_vmem_limit(est, limit_cap)),
            )(o_re2, o_im2, p_re2, p_im2, f_stack)

        try:
            out = run(True)
        except Exception:          # fall back if Buffered(1) is unsupported
            out = run(False)
        return out.reshape(b_pad, H, W)[:B]

    # ---- larger probes: two-pass DFT as two big lane-dense matmuls ---------
    fh_planes = [fhr, fhi]
    fw_planes = [fwr, fwi]
    if use_gauss:
        fh_planes.append(fhr + fhi)
        fw_planes.append(fwr + fwi)
    fh_stack = jnp.stack(fh_planes).astype(mxu_dtype)        # (n_f, H, H)
    fw_stack = jnp.stack(fw_planes).astype(mxu_dtype)        # (n_f, W, W)

    inv_bytes = n_f * (H * H + W * W) * itemsize + 2 * M * HW * 4
    bytes_per_row = HW * 4 * 28                               # pipelined I/O + temporaries
    bt = b_tile or _choose_b_tile(B, bytes_per_row,
                                  max(row_budget - inv_bytes, 4 << 20))
    bt = _round_up(bt, 8)
    b_pad = _round_up(B, bt)
    if b_pad != B:
        o_re = jnp.pad(o_re, ((0, b_pad - B), (0, 0), (0, 0)))
        o_im = jnp.pad(o_im, ((0, b_pad - B), (0, 0), (0, 0)))
    grid = (b_pad // bt,)
    est = bt * bytes_per_row + 2 * inv_bytes
    kern = functools.partial(_forward_kernel_2pass, n_modes=M, use_gauss=use_gauss)

    def run(buffered):
        in_specs = [
            pl.BlockSpec((bt, H, W), lambda b: (b, 0, 0)),
            pl.BlockSpec((bt, H, W), lambda b: (b, 0, 0)),
            _inv_spec((M, H, W), lambda b: (0, 0, 0), buffered),
            _inv_spec((M, H, W), lambda b: (0, 0, 0), buffered),
            _inv_spec((n_f, H, H), lambda b: (0, 0, 0), buffered),
            _inv_spec((n_f, W, W), lambda b: (0, 0, 0), buffered),
        ]
        out_spec = pl.BlockSpec((bt, H, W), lambda b: (b, 0, 0))
        return pl.pallas_call(
            kern,
            out_shape=jax.ShapeDtypeStruct((b_pad, H, W), jnp.float32),
            grid_spec=pltpu.PrefetchScalarGridSpec(
                num_scalar_prefetch=0, grid=grid,
                in_specs=in_specs, out_specs=out_spec),
            compiler_params=pltpu.CompilerParams(
                dimension_semantics=("parallel",),
                vmem_limit_bytes=_vmem_limit(est, limit_cap)),
        )(o_re, o_im, p_re, p_im, fh_stack, fw_stack)

    try:
        out = run(True)
    except Exception:              # fall back if Buffered(1) is unsupported
        out = run(False)
    return out[:B]


def _reference(obj_patches, probe):
    psi = probe[None, :, :, :] * obj_patches[:, None, :, :]
    far = jnp.fft.fft2(psi)
    return jnp.sum(jnp.abs(far) ** 2, axis=1).astype(jnp.float32)


if __name__ == "__main__":
    key = jax.random.PRNGKey(0)

    def make_inputs(B, M, H, W, k):
        k1, k2, k3, k4 = jax.random.split(k, 4)
        obj = (jax.random.normal(k1, (B, H, W), jnp.float32)
               + 1j * jax.random.normal(k2, (B, H, W), jnp.float32)).astype(jnp.complex64)
        pr = (jax.random.normal(k3, (M, H, W), jnp.float32)
              + 1j * jax.random.normal(k4, (M, H, W), jnp.float32)).astype(jnp.complex64)
        return obj, pr

    # First case exercises the flat kron-DFT path (HW <= 256); the second
    # exercises the reshaped two-pass DFT path.
    for (B, M, H, W) in [(2, 2, 16, 16), (2, 2, 32, 32)]:
        key, sub = jax.random.split(key)
        obj_patches, probe = make_inputs(B, M, H, W, sub)
        out = jax.block_until_ready(ptycho_forward(obj_patches, probe))
        ref = _reference(obj_patches, probe)
        assert out.shape == ref.shape
        rel_err = float(jnp.max(jnp.abs(out - ref)) / jnp.max(jnp.abs(ref)))
        assert rel_err < 1e-3, (B, M, H, W, rel_err)

    print("KERNEL_OK")
</pallas_src>

<mosaic_0001>
module attributes {stable_mosaic.version = 11 : i64} {
  func.func @_forward_kernel_flat(%arg0: i32, %arg1: memref<8x256xf32, #tpu.memory_space<vmem>>, %arg2: memref<8x256xf32, #tpu.memory_space<vmem>>, %arg3: memref<2x256xf32, #tpu.memory_space<vmem>>, %arg4: memref<2x256xf32, #tpu.memory_space<vmem>>, %arg5: memref<3x256x256xf32, #tpu.memory_space<vmem>>, %arg6: memref<8x256xf32, #tpu.memory_space<vmem>>) attributes {dimension_semantics = [#tpu.dimension_semantics<parallel>], iteration_bounds = array<i64: 1>, scalar_prefetch = 0 : i64, scratch_operands = 0 : i64, tpu.core_type = #tpu.core_type<tc>, window_params = [{transform_indices = @transform_0, window_bounds = array<i64: 8, 256>}, {transform_indices = @transform_1, window_bounds = array<i64: 8, 256>}, {pipeline_mode = #tpu.pipeline_mode<synchronous>, transform_indices = @transform_2, window_bounds = array<i64: 2, 256>}, {pipeline_mode = #tpu.pipeline_mode<synchronous>, transform_indices = @transform_3, window_bounds = array<i64: 2, 256>}, {pipeline_mode = #tpu.pipeline_mode<synchronous>, transform_indices = @transform_4, window_bounds = array<i64: 3, 256, 256>}, {transform_indices = @transform_5, window_bounds = array<i64: 8, 256>}]} {
    %c0 = arith.constant 0 : index
    %c0_0 = arith.constant 0 : index
    %0 = vector.load %arg1[%c0, %c0_0] : memref<8x256xf32, #tpu.memory_space<vmem>>, vector<8x256xf32>
    %c0_1 = arith.constant 0 : index
    %c0_2 = arith.constant 0 : index
    %1 = vector.load %arg2[%c0_1, %c0_2] : memref<8x256xf32, #tpu.memory_space<vmem>>, vector<8x256xf32>
    %c0_3 = arith.constant 0 : index
    %c0_4 = arith.constant 0 : index
    %c0_5 = arith.constant 0 : index
    %2 = vector.load %arg5[%c0_3, %c0_4, %c0_5] : memref<3x256x256xf32, #tpu.memory_space<vmem>>, vector<1x256x256xf32>
    %3 = vector.shape_cast %2 : vector<1x256x256xf32> to vector<256x256xf32>
    %c1 = arith.constant 1 : index
    %c0_6 = arith.constant 0 : index
    %c0_7 = arith.constant 0 : index
    %4 = vector.load %arg5[%c1, %c0_6, %c0_7] : memref<3x256x256xf32, #tpu.memory_space<vmem>>, vector<1x256x256xf32>
    %5 = vector.shape_cast %4 : vector<1x256x256xf32> to vector<256x256xf32>
    %c0_8 = arith.constant 0 : index
    %c0_9 = arith.constant 0 : index
    %6 = vector.load %arg3[%c0_8, %c0_9] : memref<2x256xf32, #tpu.memory_space<vmem>>, vector<2x256xf32>
    %c0_10 = arith.constant 0 : index
    %c0_11 = arith.constant 0 : index
    %7 = vector.load %arg4[%c0_10, %c0_11] : memref<2x256xf32, #tpu.memory_space<vmem>>, vector<2x256xf32>
    %8 = vector.extract_strided_slice %6 {offsets = [0, 0], sizes = [1, 256], strides = [1, 1]} : vector<2x256xf32> to vector<1x256xf32>
    %9 = vector.extract_strided_slice %7 {offsets = [0, 0], sizes = [1, 256], strides = [1, 1]} : vector<2x256xf32> to vector<1x256xf32>
    %10 = vector.broadcast %8 : vector<1x256xf32> to vector<8x256xf32>
    %11 = arith.mulf %10, %0 : vector<8x256xf32>
    %12 = vector.broadcast %9 : vector<1x256xf32> to vector<8x256xf32>
    %13 = arith.mulf %12, %1 : vector<8x256xf32>
    %14 = arith.subf %11, %13 : vector<8x256xf32>
    %15 = vector.broadcast %8 : vector<1x256xf32> to vector<8x256xf32>
    %16 = arith.mulf %15, %1 : vector<8x256xf32>
    %17 = vector.broadcast %9 : vector<1x256xf32> to vector<8x256xf32>
    %18 = arith.mulf %17, %0 : vector<8x256xf32>
    %19 = arith.addf %16, %18 : vector<8x256xf32>
    %20 = vector.extract_strided_slice %6 {offsets = [1, 0], sizes = [1, 256], strides = [1, 1]} : vector<2x256xf32> to vector<1x256xf32>
    %21 = vector.extract_strided_slice %7 {offsets = [1, 0], sizes = [1, 256], strides = [1, 1]} : vector<2x256xf32> to vector<1x256xf32>
    %22 = vector.broadcast %20 : vector<1x256xf32> to vector<8x256xf32>
    %23 = arith.mulf %22, %0 : vector<8x256xf32>
    %24 = vector.broadcast %21 : vector<1x256xf32> to vector<8x256xf32>
    %25 = arith.mulf %24, %1 : vector<8x256xf32>
    %26 = arith.subf %23, %25 : vector<8x256xf32>
    %27 = vector.broadcast %20 : vector<1x256xf32> to vector<8x256xf32>
    %28 = arith.mulf %27, %1 : vector<8x256xf32>
    %29 = vector.broadcast %21 : vector<1x256xf32> to vector<8x256xf32>
    %30 = arith.mulf %29, %0 : vector<8x256xf32>
    %31 = arith.addf %28, %30 : vector<8x256xf32>
    %32 = tpu.concatenate %14, %26 in 0 : vector<8x256xf32>, vector<8x256xf32> -> vector<16x256xf32>
    %33 = tpu.concatenate %19, %31 in 0 : vector<8x256xf32>, vector<8x256xf32> -> vector<16x256xf32>
    %c2 = arith.constant 2 : index
    %c0_12 = arith.constant 0 : index
    %c0_13 = arith.constant 0 : index
    %34 = vector.load %arg5[%c2, %c0_12, %c0_13] : memref<3x256x256xf32, #tpu.memory_space<vmem>>, vector<1x256x256xf32>
    %35 = vector.shape_cast %34 : vector<1x256x256xf32> to vector<256x256xf32>
    %36 = arith.addf %32, %33 : vector<16x256xf32>
    %cst = arith.constant dense<0.000000e+00> : vector<16x256xf32>
    %37 = tpu.matmul %32, %3, %cst {dimension_numbers = #tpu.dot_dimension_numbers<[1], [0], [0], [1], [0, 0, 1, 1], [], []>} : vector<16x256xf32>, vector<256x256xf32>, vector<16x256xf32> -> vector<16x256xf32>
    %cst_14 = arith.constant dense<0.000000e+00> : vector<16x256xf32>
    %38 = tpu.matmul %33, %5, %cst_14 {dimension_numbers = #tpu.dot_dimension_numbers<[1], [0], [0], [1], [0, 0, 1, 1], [], []>} : vector<16x256xf32>, vector<256x256xf32>, vector<16x256xf32> -> vector<16x256xf32>
    %cst_15 = arith.constant dense<0.000000e+00> : vector<16x256xf32>
    %39 = tpu.matmul %36, %35, %cst_15 {dimension_numbers = #tpu.dot_dimension_numbers<[1], [0], [0], [1], [0, 0, 1, 1], [], []>} : vector<16x256xf32>, vector<256x256xf32>, vector<16x256xf32> -> vector<16x256xf32>
    %40 = arith.subf %37, %38 : vector<16x256xf32>
    %41 = arith.subf %39, %37 : vector<16x256xf32>
    %42 = arith.subf %41, %38 : vector<16x256xf32>
    %43 = arith.mulf %40, %40 : vector<16x256xf32>
    %44 = arith.mulf %42, %42 : vector<16x256xf32>
    %45 = arith.addf %43, %44 : vector<16x256xf32>
    %46 = vector.extract_strided_slice %45 {offsets = [0, 0], sizes = [8, 256], strides = [1, 1]} : vector<16x256xf32> to vector<8x256xf32>
    %47 = vector.extract_strided_slice %45 {offsets = [8, 0], sizes = [8, 256], strides = [1, 1]} : vector<16x256xf32> to vector<8x256xf32>
    %48 = arith.addf %46, %47 : vector<8x256xf32>
    %c0_16 = arith.constant 0 : index
    %c0_17 = arith.constant 0 : index
    %49 = vector.load %arg6[%c0_16, %c0_17] : memref<8x256xf32, #tpu.memory_space<vmem>>, vector<8x256xf32>
    tpu.vector_store %arg6[%c0_16, %c0_17], %48 {strides = array<i32>} : memref<8x256xf32, #tpu.memory_space<vmem>>, vector<8x256xf32>,
    return
  }
  func.func @transform_0(%arg0: i32) -> (i32, i32) {
    %c0_i32 = arith.constant 0 : i32
    %c0_i32_0 = arith.constant 0 : i32
    return %arg0, %c0_i32 : i32, i32
  }
  func.func @transform_1(%arg0: i32) -> (i32, i32) {
    %c0_i32 = arith.constant 0 : i32
    %c0_i32_0 = arith.constant 0 : i32
    return %arg0, %c0_i32 : i32, i32
  }
  func.func @transform_2(%arg0: i32) -> (i32, i32) {
    %c0_i32 = arith.constant 0 : i32
    %c0_i32_0 = arith.constant 0 : i32
    %c0_i32_1 = arith.constant 0 : i32
    return %c0_i32, %c0_i32_0 : i32, i32
  }
  func.func @transform_3(%arg0: i32) -> (i32, i32) {
    %c0_i32 = arith.constant 0 : i32
    %c0_i32_0 = arith.constant 0 : i32
    %c0_i32_1 = arith.constant 0 : i32
    return %c0_i32, %c0_i32_0 : i32, i32
  }
  func.func @transform_4(%arg0: i32) -> (i32, i32, i32) {
    %c0_i32 = arith.constant 0 : i32
    %c0_i32_0 = arith.constant 0 : i32
    %c0_i32_1 = arith.constant 0 : i32
    %c0_i32_2 = arith.constant 0 : i32
    return %c0_i32, %c0_i32_0, %c0_i32_1 : i32, i32, i32
  }
  func.func @transform_5(%arg0: i32) -> (i32, i32) {
    %c0_i32 = arith.constant 0 : i32
    %c0_i32_0 = arith.constant 0 : i32
    return %arg0, %c0_i32 : i32, i32
  }
}

module attributes {stable_mosaic.version = 11 : i64} {
  func.func @_forward_kernel_flat(%arg0: i32, %arg1: memref<8x256xf32, #tpu.memory_space<vmem>>, %arg2: memref<8x256xf32, #tpu.memory_space<vmem>>, %arg3: memref<2x256xf32, #tpu.memory_space<vmem>>, %arg4: memref<2x256xf32, #tpu.memory_space<vmem>>, %arg5: memref<3x256x256xf32, #tpu.memory_space<vmem>>, %arg6: memref<8x256xf32, #tpu.memory_space<vmem>>) attributes {dimension_semantics = [#tpu.dimension_semantics<parallel>], iteration_bounds = array<i64: 1>, scalar_prefetch = 0 : i64, scratch_operands = 0 : i64, tpu.core_type = #tpu.core_type<tc>, window_params = [{transform_indices = @transform_0, window_bounds = array<i64: 8, 256>}, {transform_indices = @transform_1, window_bounds = array<i64: 8, 256>}, {pipeline_mode = #tpu.pipeline_mode<synchronous>, transform_indices = @transform_2, window_bounds = array<i64: 2, 256>}, {pipeline_mode = #tpu.pipeline_mode<synchronous>, transform_indices = @transform_3, window_bounds = array<i64: 2, 256>}, {pipeline_mode = #tpu.pipeline_mode<synchronous>, transform_indices = @transform_4, window_bounds = array<i64: 3, 256, 256>}, {transform_indices = @transform_5, window_bounds = array<i64: 8, 256>}]} {
    %c0 = arith.constant 0 : index
    %c0_0 = arith.constant 0 : index
    %0 = vector.load %arg1[%c0, %c0_0] : memref<8x256xf32, #tpu.memory_space<vmem>>, vector<8x256xf32>
    %c0_1 = arith.constant 0 : index
    %c0_2 = arith.constant 0 : index
    %1 = vector.load %arg2[%c0_1, %c0_2] : memref<8x256xf32, #tpu.memory_space<vmem>>, vector<8x256xf32>
    %c0_3 = arith.constant 0 : index
    %c0_4 = arith.constant 0 : index
    %c0_5 = arith.constant 0 : index
    %2 = vector.load %arg5[%c0_3, %c0_4, %c0_5] : memref<3x256x256xf32, #tpu.memory_space<vmem>>, vector<1x256x256xf32>
    %3 = vector.shape_cast %2 : vector<1x256x256xf32> to vector<256x256xf32>
    %c1 = arith.constant 1 : index
    %c0_6 = arith.constant 0 : index
    %c0_7 = arith.constant 0 : index
    %4 = vector.load %arg5[%c1, %c0_6, %c0_7] : memref<3x256x256xf32, #tpu.memory_space<vmem>>, vector<1x256x256xf32>
    %5 = vector.shape_cast %4 : vector<1x256x256xf32> to vector<256x256xf32>
    %c0_8 = arith.constant 0 : index
    %c0_9 = arith.constant 0 : index
    %6 = vector.load %arg3[%c0_8, %c0_9] : memref<2x256xf32, #tpu.memory_space<vmem>>, vector<2x256xf32>
    %c0_10 = arith.constant 0 : index
    %c0_11 = arith.constant 0 : index
    %7 = vector.load %arg4[%c0_10, %c0_11] : memref<2x256xf32, #tpu.memory_space<vmem>>, vector<2x256xf32>
    %8 = vector.extract_strided_slice %6 {offsets = [0, 0], sizes = [1, 256], strides = [1, 1]} : vector<2x256xf32> to vector<1x256xf32>
    %9 = vector.extract_strided_slice %7 {offsets = [0, 0], sizes = [1, 256], strides = [1, 1]} : vector<2x256xf32> to vector<1x256xf32>
    %10 = vector.broadcast %8 : vector<1x256xf32> to vector<8x256xf32>
    %11 = arith.mulf %10, %0 : vector<8x256xf32>
    %12 = vector.broadcast %9 : vector<1x256xf32> to vector<8x256xf32>
    %13 = arith.mulf %12, %1 : vector<8x256xf32>
    %14 = arith.subf %11, %13 : vector<8x256xf32>
    %15 = vector.broadcast %8 : vector<1x256xf32> to vector<8x256xf32>
    %16 = arith.mulf %15, %1 : vector<8x256xf32>
    %17 = vector.broadcast %9 : vector<1x256xf32> to vector<8x256xf32>
    %18 = arith.mulf %17, %0 : vector<8x256xf32>
    %19 = arith.addf %16, %18 : vector<8x256xf32>
    %20 = vector.extract_strided_slice %6 {offsets = [1, 0], sizes = [1, 256], strides = [1, 1]} : vector<2x256xf32> to vector<1x256xf32>
    %21 = vector.extract_strided_slice %7 {offsets = [1, 0], sizes = [1, 256], strides = [1, 1]} : vector<2x256xf32> to vector<1x256xf32>
    %22 = vector.broadcast %20 : vector<1x256xf32> to vector<8x256xf32>
    %23 = arith.mulf %22, %0 : vector<8x256xf32>
    %24 = vector.broadcast %21 : vector<1x256xf32> to vector<8x256xf32>
    %25 = arith.mulf %24, %1 : vector<8x256xf32>
    %26 = arith.subf %23, %25 : vector<8x256xf32>
    %27 = vector.broadcast %20 : vector<1x256xf32> to vector<8x256xf32>
    %28 = arith.mulf %27, %1 : vector<8x256xf32>
    %29 = vector.broadcast %21 : vector<1x256xf32> to vector<8x256xf32>
    %30 = arith.mulf %29, %0 : vector<8x256xf32>
    %31 = arith.addf %28, %30 : vector<8x256xf32>
    %32 = tpu.concatenate %14, %26 in 0 : vector<8x256xf32>, vector<8x256xf32> -> vector<16x256xf32>
    %33 = tpu.concatenate %19, %31 in 0 : vector<8x256xf32>, vector<8x256xf32> -> vector<16x256xf32>
    %c2 = arith.constant 2 : index
    %c0_12 = arith.constant 0 : index
    %c0_13 = arith.constant 0 : index
    %34 = vector.load %arg5[%c2, %c0_12, %c0_13] : memref<3x256x256xf32, #tpu.memory_space<vmem>>, vector<1x256x256xf32>
    %35 = vector.shape_cast %34 : vector<1x256x256xf32> to vector<256x256xf32>
    %36 = arith.addf %32, %33 : vector<16x256xf32>
    %cst = arith.constant dense<0.000000e+00> : vector<16x256xf32>
    %37 = tpu.matmul %32, %3, %cst {dimension_numbers = #tpu.dot_dimension_numbers<[1], [0], [0], [1], [0, 0, 1, 1], [], []>} : vector<16x256xf32>, vector<256x256xf32>, vector<16x256xf32> -> vector<16x256xf32>
    %cst_14 = arith.constant dense<0.000000e+00> : vector<16x256xf32>
    %38 = tpu.matmul %33, %5, %cst_14 {dimension_numbers = #tpu.dot_dimension_numbers<[1], [0], [0], [1], [0, 0, 1, 1], [], []>} : vector<16x256xf32>, vector<256x256xf32>, vector<16x256xf32> -> vector<16x256xf32>
    %cst_15 = arith.constant dense<0.000000e+00> : vector<16x256xf32>
    %39 = tpu.matmul %36, %35, %cst_15 {dimension_numbers = #tpu.dot_dimension_numbers<[1], [0], [0], [1], [0, 0, 1, 1], [], []>} : vector<16x256xf32>, vector<256x256xf32>, vector<16x256xf32> -> vector<16x256xf32>
    %40 = arith.subf %37, %38 : vector<16x256xf32>
    %41 = arith.subf %39, %37 : vector<16x256xf32>
    %42 = arith.subf %41, %38 : vector<16x256xf32>
    %43 = arith.mulf %40, %40 : vector<16x256xf32>
    %44 = arith.mulf %42, %42 : vector<16x256xf32>
    %45 = arith.addf %43, %44 : vector<16x256xf32>
    %46 = vector.extract_strided_slice %45 {offsets = [0, 0], sizes = [8, 256], strides = [1, 1]} : vector<16x256xf32> to vector<8x256xf32>
    %47 = vector.extract_strided_slice %45 {offsets = [8, 0], sizes = [8, 256], strides = [1, 1]} : vector<16x256xf32> to vector<8x256xf32>
    %48 = arith.addf %46, %47 : vector<8x256xf32>
    %c0_16 = arith.constant 0 : index
    %c0_17 = arith.constant 0 : index
    %49 = vector.load %arg6[%c0_16, %c0_17] : memref<8x256xf32, #tpu.memory_space<vmem>>, vector<8x256xf32>
    tpu.vector_store %arg6[%c0_16, %c0_17], %48 {strides = array<i32>} : memref<8x256xf32, #tpu.memory_space<vmem>>, vector<8x256xf32>,
    return
  }
  func.func @transform_0(%arg0: i32) -> (i32, i32) {
    %c0_i32 = arith.constant 0 : i32
    %c0_i32_0 = arith.constant 0 : i32
    return %arg0, %c0_i32 : i32, i32
  }
  func.func @transform_1(%arg0: i32) -> (i32, i32) {
    %c0_i32 = arith.constant 0 : i32
    %c0_i32_0 = arith.constant 0 : i32
    return %arg0, %c0_i32 : i32, i32
  }
  func.func @transform_2(%arg0: i32) -> (i32, i32) {
    %c0_i32 = arith.constant 0 : i32
    %c0_i32_0 = arith.constant 0 : i32
    %c0_i32_1 = arith.constant 0 : i32
    return %c0_i32, %c0_i32_0 : i32, i32
  }
  func.func @transform_3(%arg0: i32) -> (i32, i32) {
    %c0_i32 = arith.constant 0 : i32
    %c0_i32_0 = arith.constant 0 : i32
    %c0_i32_1 = arith.constant 0 : i32
    return %c0_i32, %c0_i32_0 : i32, i32
  }
  func.func @transform_4(%arg0: i32) -> (i32, i32, i32) {
    %c0_i32 = arith.constant 0 : i32
    %c0_i32_0 = arith.constant 0 : i32
    %c0_i32_1 = arith.constant 0 : i32
    %c0_i32_2 = arith.constant 0 : i32
    return %c0_i32, %c0_i32_0, %c0_i32_1 : i32, i32, i32
  }
  func.func @transform_5(%arg0: i32) -> (i32, i32) {
    %c0_i32 = arith.constant 0 : i32
    %c0_i32_0 = arith.constant 0 : i32
    return %arg0, %c0_i32 : i32, i32
  }
}

</mosaic_0001>

<llo_original>
// kernel: tpu_custom_call.1
$region0: #{tpu_custom_call.1}
  #allocation0 [shape = 'u32[]', space=smem, size = 0x4, offset = 0x4, fixed_abs, tag = 'smem constant byte address 0x4 - core index']
  #allocation1 [shape = 'u32[144,128]{1,0:T(1,128)}', space=vmem, size = 0x12000, scoped, tag = 'internal scratch']
  %s0 = inlined_call_operand.hbm [shape: f32[8,256], index: 0, kind: input, shape index: {}]
  %s1 = inlined_call_operand.hbm [shape: f32[8,256], index: 1, kind: input, shape index: {}]
  %s2 = inlined_call_operand.vmem [shape: f32[2,256], index: 2, kind: input, shape index: {}]
  %s3 = inlined_call_operand.vmem [shape: f32[2,256], index: 3, kind: input, shape index: {}]
  %s4 = inlined_call_operand.hbm [shape: f32[3,256,256], index: 4, kind: input, shape index: {}]
  %s5 = inlined_call_operand.hbm [shape: f32[8,256], index: 5, kind: output, shape index: {}]
  %s6 = sld [smem:[#allocation0]]
  $region42: #{tpu_custom_call.1} parent=0
    _
  %s8 = ssub.s32 1, %s6
  %s9 = scalar_select 0, %s8, %s6
  $region1: #{tpu_custom_call.1} parent=0
    #allocation2 [shape = 'u8[8192]{0}', space=vmem, size = 0x2000, scoped, tag = 'input window, operand 0, single buffered']
    #allocation3 [shape = 's32[1]{0}', space=sflag, size = 0x4, scoped, tag = 'scoped memory for tpu_custom_call.1']
    #allocation4 [shape = 's32[1]{0}', space=sflag, size = 0x4, scoped, tag = 'scoped memory for tpu_custom_call.1']
    #allocation5 [shape = 'u8[8192]{0}', space=vmem, size = 0x2000, scoped, tag = 'input window, operand 1, single buffered']
    #allocation6 [shape = 's32[1]{0}', space=sflag, size = 0x4, scoped, tag = 'scoped memory for tpu_custom_call.1']
    #allocation7 [shape = 'u8[786432]{0}', space=vmem, size = 0xc0000, scoped, tag = 'input window, operand 4, single buffered']
    #allocation8 [shape = 'u8[8192]{0}', space=vmem, size = 0x2000, scoped, tag = 'output window, operand 0, single buffered']
    %10 = vsyncpa [#allocation3], 0
    %11 = vsyncpa [#allocation6], 0
    %12 = vsyncpa [#allocation4], 0
    // Predicated region
    $region2: #{tpu_custom_call.1} parent=1 // pred_check
      _
    $region3: #{tpu_custom_call.1} parent=1 // pred_check_branch
      %14 = sbr.rel (0) target = $region5
    $region4: #{tpu_custom_call.1} parent=1 // pred_region
      %s16 = ssub.s32 256, 256
      %17 = vsyncadd [#allocation3], %s16
      %s19 = sshll.u32 [#allocation2], 4
      %s20 = int_to_ptr.vmem [resolvable:$true] %s19
      %22 = dma.hbm_to_vmem [thread:$0]  %s0, 256, %s20, [#allocation3]
    $region5: #{tpu_custom_call.1} parent=1 // pred_fallthru
      _
    // Predicated region
    $region6: #{tpu_custom_call.1} parent=1 // pred_check
      _
    $region7: #{tpu_custom_call.1} parent=1 // pred_check_branch
      %24 = sbr.rel (0) target = $region9
    $region8: #{tpu_custom_call.1} parent=1 // pred_region
      %s26 = ssub.s32 256, 256
      %27 = vsyncadd [#allocation6], %s26
      %s29 = sshll.u32 [#allocation5], 4
      %s30 = int_to_ptr.vmem [resolvable:$true] %s29
      %32 = dma.hbm_to_vmem [thread:$0]  %s1, 256, %s30, [#allocation6]
    $region9: #{tpu_custom_call.1} parent=1 // pred_fallthru
      _
    // Predicated region
    $region10: #{tpu_custom_call.1} parent=1 // pred_check
      _
    $region11: #{tpu_custom_call.1} parent=1 // pred_check_branch
      %34 = sbr.rel (0) target = $region13
    $region12: #{tpu_custom_call.1} parent=1 // pred_region
      _
    $region13: #{tpu_custom_call.1} parent=1 // pred_fallthru
      _
    // Predicated region
    $region14: #{tpu_custom_call.1} parent=1 // pred_check
      _
    $region15: #{tpu_custom_call.1} parent=1 // pred_check_branch
      %36 = sbr.rel (0) target = $region17
    $region16: #{tpu_custom_call.1} parent=1 // pred_region
      _
    $region17: #{tpu_custom_call.1} parent=1 // pred_fallthru
      _
    // Predicated region
    $region18: #{tpu_custom_call.1} parent=1 // pred_check
      _
    $region19: #{tpu_custom_call.1} parent=1 // pred_check_branch
      %38 = sbr.rel (0) target = $region21
    $region20: #{tpu_custom_call.1} parent=1 // pred_region
      %s40 = ssub.s32 24576, 24576
      %41 = vsyncadd [#allocation6], %s40
      %s42 = sshll.u32 [#allocation7], 4
      %s43 = int_to_ptr.vmem [resolvable:$true] %s42
      %48 = dma.hbm_to_vmem [thread:$0]  %s4, 24576, %s43, [#allocation6], 256, 256, 16
    $region21: #{tpu_custom_call.1} parent=1 // pred_fallthru
      _
    // Predicated region
    $region22: #{tpu_custom_call.1} parent=1 // pred_check
      _
    $region23: #{tpu_custom_call.1} parent=1 // pred_check_branch
      %50 = sbr.rel (0) target = $region25
    $region24: #{tpu_custom_call.1} parent=1 // pred_region
      %51 = dma.done [#allocation3], 256
    $region25: #{tpu_custom_call.1} parent=1 // pred_fallthru
      _
    // Predicated region
    $region26: #{tpu_custom_call.1} parent=1 // pred_check
      _
    $region27: #{tpu_custom_call.1} parent=1 // pred_check_branch
      %53 = sbr.rel (0) target = $region29
    $region28: #{tpu_custom_call.1} parent=1 // pred_region
      %54 = dma.done [#allocation6], 256
    $region29: #{tpu_custom_call.1} parent=1 // pred_fallthru
      _
    // Predicated region
    $region30: #{tpu_custom_call.1} parent=1 // pred_check
      _
    $region31: #{tpu_custom_call.1} parent=1 // pred_check_branch
      %56 = sbr.rel (0) target = $region33
    $region32: #{tpu_custom_call.1} parent=1 // pred_region
      %57 = dma.done [#allocation6], 24576
    $region33: #{tpu_custom_call.1} parent=1 // pred_fallthru
      _
    %v58 = vld [vmem:[#allocation2] sm:$0xff]
    %v59 = vld [vmem:[#allocation2 + $0x8] sm:$0xff]
    %v60 = vld [vmem:[#allocation5] sm:$0xff]
    %v61 = vld [vmem:[#allocation5 + $0x8] sm:$0xff]
    %v62 = vld [vmem:[#allocation7] sm:$0xff]
    %v63 = vld [vmem:[#allocation7 + $0x8] sm:$0xff]
    %v64 = vld [vmem:[#allocation7 + $0x10] sm:$0xff]
    %v65 = vld [vmem:[#allocation7 + $0x18] sm:$0xff]
    %v66 = vld [vmem:[#allocation7 + $0x20] sm:$0xff]
    %v67 = vld [vmem:[#allocation7 + $0x28] sm:$0xff]
    %v68 = vld [vmem:[#allocation7 + $0x30] sm:$0xff]
    %v69 = vld [vmem:[#allocation7 + $0x38] sm:$0xff]
    %v70 = vld [vmem:[#allocation7 + $0x40] sm:$0xff]
    %v71 = vld [vmem:[#allocation7 + $0x48] sm:$0xff]
    %v72 = vld [vmem:[#allocation7 + $0x50] sm:$0xff]
    %v73 = vld [vmem:[#allocation7 + $0x58] sm:$0xff]
    %v74 = vld [vmem:[#allocation7 + $0x60] sm:$0xff]
    %v75 = vld [vmem:[#allocation7 + $0x68] sm:$0xff]
    %v76 = vld [vmem:[#allocation7 + $0x70] sm:$0xff]
    %v77 = vld [vmem:[#allocation7 + $0x78] sm:$0xff]
    %v78 = vld [vmem:[#allocation7 + $0x80] sm:$0xff]
    %v79 = vld [vmem:[#allocation7 + $0x88] sm:$0xff]
    %v80 = vld [vmem:[#allocation7 + $0x90] sm:$0xff]
    %v81 = vld [vmem:[#allocation7 + $0x98] sm:$0xff]
    %v82 = vld [vmem:[#allocation7 + $0xa0] sm:$0xff]
    %v83 = vld [vmem:[#allocation7 + $0xa8] sm:$0xff]
    %v84 = vld [vmem:[#allocation7 + $0xb0] sm:$0xff]
    %v85 = vld [vmem:[#allocation7 + $0xb8] sm:$0xff]
    %v86 = vld [vmem:[#allocation7 + $0xc0] sm:$0xff]
    %v87 = vld [vmem:[#allocation7 + $0xc8] sm:$0xff]
    %v88 = vld [vmem:[#allocation7 + $0xd0] sm:$0xff]
    %v89 = vld [vmem:[#allocation7 + $0xd8] sm:$0xff]
    %v90 = vld [vmem:[#allocation7 + $0xe0] sm:$0xff]
    %v91 = vld [vmem:[#allocation7 + $0xe8] sm:$0xff]
    %v92 = vld [vmem:[#allocation7 + $0xf0] sm:$0xff]
    %v93 = vld [vmem:[#allocation7 + $0xf8] sm:$0xff]
    %v94 = vld [vmem:[#allocation7 + $0x100] sm:$0xff]
    %v95 = vld [vmem:[#allocation7 + $0x108] sm:$0xff]
    %v96 = vld [vmem:[#allocation7 + $0x110] sm:$0xff]
    %v97 = vld [vmem:[#allocation7 + $0x118] sm:$0xff]
    %v98 = vld [vmem:[#allocation7 + $0x120] sm:$0xff]
    %v99 = vld [vmem:[#allocation7 + $0x128] sm:$0xff]
    %v100 = vld [vmem:[#allocation7 + $0x130] sm:$0xff]
    %v101 = vld [vmem:[#allocation7 + $0x138] sm:$0xff]
    %v102 = vld [vmem:[#allocation7 + $0x140] sm:$0xff]
    %v103 = vld [vmem:[#allocation7 + $0x148] sm:$0xff]
    %v104 = vld [vmem:[#allocation7 + $0x150] sm:$0xff]
    %v105 = vld [vmem:[#allocation7 + $0x158] sm:$0xff]
    %v106 = vld [vmem:[#allocation7 + $0x160] sm:$0xff]
    %v107 = vld [vmem:[#allocation7 + $0x168] sm:$0xff]
    %v108 = vld [vmem:[#allocation7 + $0x170] sm:$0xff]
    %v109 = vld [vmem:[#allocation7 + $0x178] sm:$0xff]
    %v110 = vld [vmem:[#allocation7 + $0x180] sm:$0xff]
    %v111 = vld [vmem:[#allocation7 + $0x188] sm:$0xff]
    %v112 = vld [vmem:[#allocation7 + $0x190] sm:$0xff]
    %v113 = vld [vmem:[#allocation7 + $0x198] sm:$0xff]
    %v114 = vld [vmem:[#allocation7 + $0x1a0] sm:$0xff]
    %v115 = vld [vmem:[#allocation7 + $0x1a8] sm:$0xff]
    %v116 = vld [vmem:[#allocation7 + $0x1b0] sm:$0xff]
    %v117 = vld [vmem:[#allocation7 + $0x1b8] sm:$0xff]
    %v118 = vld [vmem:[#allocation7 + $0x1c0] sm:$0xff]
    %v119 = vld [vmem:[#allocation7 + $0x1c8] sm:$0xff]
    %v120 = vld [vmem:[#allocation7 + $0x1d0] sm:$0xff]
    %v121 = vld [vmem:[#allocation7 + $0x1d8] sm:$0xff]
    %v122 = vld [vmem:[#allocation7 + $0x1e0] sm:$0xff]
    %v123 = vld [vmem:[#allocation7 + $0x1e8] sm:$0xff]
    %v124 = vld [vmem:[#allocation7 + $0x1f0] sm:$0xff]
    %v125 = vld [vmem:[#allocation7 + $0x1f8] sm:$0xff]
    %s126 = scalar_lea.vmem [#allocation7], 512
    %v127 = vld [vmem:[%s126] sm:$0xff]
    %v128 = vld [vmem:[%s126 + $0x8] sm:$0xff]
    %v129 = vld [vmem:[%s126 + $0x10] sm:$0xff]
    %v130 = vld [vmem:[%s126 + $0x18] sm:$0xff]
    %v131 = vld [vmem:[%s126 + $0x20] sm:$0xff]
    %v132 = vld [vmem:[%s126 + $0x28] sm:$0xff]
    %v133 = vld [vmem:[%s126 + $0x30] sm:$0xff]
    %v134 = vld [vmem:[%s126 + $0x38] sm:$0xff]
    %v135 = vld [vmem:[%s126 + $0x40] sm:$0xff]
    %v136 = vld [vmem:[%s126 + $0x48] sm:$0xff]
    %v137 = vld [vmem:[%s126 + $0x50] sm:$0xff]
    %v138 = vld [vmem:[%s126 + $0x58] sm:$0xff]
    %v139 = vld [vmem:[%s126 + $0x60] sm:$0xff]
    %v140 = vld [vmem:[%s126 + $0x68] sm:$0xff]
    %v141 = vld [vmem:[%s126 + $0x70] sm:$0xff]
    %v142 = vld [vmem:[%s126 + $0x78] sm:$0xff]
    %v143 = vld [vmem:[%s126 + $0x80] sm:$0xff]
    %v144 = vld [vmem:[%s126 + $0x88] sm:$0xff]
    %v145 = vld [vmem:[%s126 + $0x90] sm:$0xff]
    %v146 = vld [vmem:[%s126 + $0x98] sm:$0xff]
    %v147 = vld [vmem:[%s126 + $0xa0] sm:$0xff]
    %v148 = vld [vmem:[%s126 + $0xa8] sm:$0xff]
    %v149 = vld [vmem:[%s126 + $0xb0] sm:$0xff]
    %v150 = vld [vmem:[%s126 + $0xb8] sm:$0xff]
    %v151 = vld [vmem:[%s126 + $0xc0] sm:$0xff]
    %v152 = vld [vmem:[%s126 + $0xc8] sm:$0xff]
    %v153 = vld [vmem:[%s126 + $0xd0] sm:$0xff]
    %v154 = vld [vmem:[%s126 + $0xd8] sm:$0xff]
    %v155 = vld [vmem:[%s126 + $0xe0] sm:$0xff]
    %v156 = vld [vmem:[%s126 + $0xe8] sm:$0xff]
    %v157 = vld [vmem:[%s126 + $0xf0] sm:$0xff]
    %v158 = vld [vmem:[%s126 + $0xf8] sm:$0xff]
    %v159 = vld [vmem:[%s126 + $0x100] sm:$0xff]
    %v160 = vld [vmem:[%s126 + $0x108] sm:$0xff]
    %v161 = vld [vmem:[%s126 + $0x110] sm:$0xff]
    %v162 = vld [vmem:[%s126 + $0x118] sm:$0xff]
    %v163 = vld [vmem:[%s126 + $0x120] sm:$0xff]
    %v164 = vld [vmem:[%s126 + $0x128] sm:$0xff]
    %v165 = vld [vmem:[%s126 + $0x130] sm:$0xff]
    %v166 = vld [vmem:[%s126 + $0x138] sm:$0xff]
    %v167 = vld [vmem:[%s126 + $0x140] sm:$0xff]
    %v168 = vld [vmem:[%s126 + $0x148] sm:$0xff]
    %v169 = vld [vmem:[%s126 + $0x150] sm:$0xff]
    %v170 = vld [vmem:[%s126 + $0x158] sm:$0xff]
    %v171 = vld [vmem:[%s126 + $0x160] sm:$0xff]
    %v172 = vld [vmem:[%s126 + $0x168] sm:$0xff]
    %v173 = vld [vmem:[%s126 + $0x170] sm:$0xff]
    %v174 = vld [vmem:[%s126 + $0x178] sm:$0xff]
    %v175 = vld [vmem:[%s126 + $0x180] sm:$0xff]
    %v176 = vld [vmem:[%s126 + $0x188] sm:$0xff]
    %v177 = vld [vmem:[%s126 + $0x190] sm:$0xff]
    %v178 = vld [vmem:[%s126 + $0x198] sm:$0xff]
    %v179 = vld [vmem:[%s126 + $0x1a0] sm:$0xff]
    %v180 = vld [vmem:[%s126 + $0x1a8] sm:$0xff]
    %v181 = vld [vmem:[%s126 + $0x1b0] sm:$0xff]
    %v182 = vld [vmem:[%s126 + $0x1b8] sm:$0xff]
    %v183 = vld [vmem:[%s126 + $0x1c0] sm:$0xff]
    %v184 = vld [vmem:[%s126 + $0x1c8] sm:$0xff]
    %v185 = vld [vmem:[%s126 + $0x1d0] sm:$0xff]
    %v186 = vld [vmem:[%s126 + $0x1d8] sm:$0xff]
    %v187 = vld [vmem:[%s126 + $0x1e0] sm:$0xff]
    %v188 = vld [vmem:[%s126 + $0x1e8] sm:$0xff]
    %v189 = vld [vmem:[%s126 + $0x1f0] sm:$0xff]
    %v190 = vld [vmem:[%s126 + $0x1f8] sm:$0xff]
    %v191 = vld [vmem:[%s2] sm:$0xf]
    %v192 = vld [vmem:[%s3] sm:$0xf]
    %v194 = vlaneseq
    %v195 = vshrl.u32 %v194, 7
    %v196 = vsub.s32 0, %v195
    %v197 = vrot.slane %v191, %v196
    %v198 = vlaneseq
    %v199 = vshrl.u32 %v198, 7
    %v200 = vsub.s32 2, %v199
    %v201 = vrot.slane %v191, %v200
    %v204 = vlaneseq
    %v205 = vshrl.u32 %v204, 7
    %v206 = vsub.s32 0, %v205
    %v207 = vrot.slane %v197, %v206
    %v208 = vlaneseq
    %v209 = vshrl.u32 %v208, 7
    %v210 = vsub.s32 0, %v209
    %v211 = vrot.slane %v201, %v210
    %v212 = vmul.f32 %v207, %v58
    %v213 = vmul.f32 %v211, %v59
    %v215 = vlaneseq
    %v216 = vshrl.u32 %v215, 7
    %v217 = vsub.s32 0, %v216
    %v218 = vrot.slane %v192, %v217
    %v219 = vlaneseq
    %v220 = vshrl.u32 %v219, 7
    %v221 = vsub.s32 2, %v220
    %v222 = vrot.slane %v192, %v221
    %v225 = vlaneseq
    %v226 = vshrl.u32 %v225, 7
    %v227 = vsub.s32 0, %v226
    %v228 = vrot.slane %v218, %v227
    %v229 = vlaneseq
    %v230 = vshrl.u32 %v229, 7
    %v231 = vsub.s32 0, %v230
    %v232 = vrot.slane %v222, %v231
    %v233 = vmul.f32 %v228, %v60
    %v234 = vmul.f32 %v232, %v61
    %v235 = vsub.f32 %v212, %v233
    %v236 = vsub.f32 %v213, %v234
    %v237 = vmul.f32 %v207, %v60
    %v238 = vmul.f32 %v211, %v61
    %v239 = vmul.f32 %v228, %v58
    %v240 = vmul.f32 %v232, %v59
    %v241 = vadd.f32 %v237, %v239
    %v242 = vadd.f32 %v238, %v240
    %v243 = vlaneseq
    %v244 = vshrl.u32 %v243, 7
    %v245 = vsub.s32 1, %v244
    %v246 = vrot.slane %v191, %v245
    %v247 = vlaneseq
    %v248 = vshrl.u32 %v247, 7
    %v249 = vsub.s32 3, %v248
    %v250 = vrot.slane %v191, %v249
    %v253 = vlaneseq
    %v254 = vshrl.u32 %v253, 7
    %v255 = vsub.s32 1, %v254
    %v256 = vrot.slane %v246, %v255
    %v257 = vlaneseq
    %v258 = vshrl.u32 %v257, 7
    %v259 = vsub.s32 1, %v258
    %v260 = vrot.slane %v250, %v259
    %v261 = vmul.f32 %v256, %v58
    %v262 = vmul.f32 %v260, %v59
    %v263 = vlaneseq
    %v264 = vshrl.u32 %v263, 7
    %v265 = vsub.s32 1, %v264
    %v266 = vrot.slane %v192, %v265
    %v267 = vlaneseq
    %v268 = vshrl.u32 %v267, 7
    %v269 = vsub.s32 3, %v268
    %v270 = vrot.slane %v192, %v269
    %v273 = vlaneseq
    %v274 = vshrl.u32 %v273, 7
    %v275 = vsub.s32 1, %v274
    %v276 = vrot.slane %v266, %v275
    %v277 = vlaneseq
    %v278 = vshrl.u32 %v277, 7
    %v279 = vsub.s32 1, %v278
    %v280 = vrot.slane %v270, %v279
    %v281 = vmul.f32 %v276, %v60
    %v282 = vmul.f32 %v280, %v61
    %v283 = vsub.f32 %v261, %v281
    %v284 = vsub.f32 %v262, %v282
    %v285 = vmul.f32 %v256, %v60
    %v286 = vmul.f32 %v260, %v61
    %v287 = vmul.f32 %v276, %v58
    %v288 = vmul.f32 %v280, %v59
    %v289 = vadd.f32 %v285, %v287
    %v290 = vadd.f32 %v286, %v288
    %s291 = scalar_lea.vmem [#allocation7], 1024
    %v292 = vld [vmem:[%s291] sm:$0xff]
    %v293 = vld [vmem:[%s291 + $0x8] sm:$0xff]
    %v294 = vld [vmem:[%s291 + $0x10] sm:$0xff]
    %v295 = vld [vmem:[%s291 + $0x18] sm:$0xff]
    %v296 = vld [vmem:[%s291 + $0x20] sm:$0xff]
    %v297 = vld [vmem:[%s291 + $0x28] sm:$0xff]
    %v298 = vld [vmem:[%s291 + $0x30] sm:$0xff]
    %v299 = vld [vmem:[%s291 + $0x38] sm:$0xff]
    %v300 = vld [vmem:[%s291 + $0x40] sm:$0xff]
    %v301 = vld [vmem:[%s291 + $0x48] sm:$0xff]
    %v302 = vld [vmem:[%s291 + $0x50] sm:$0xff]
    %v303 = vld [vmem:[%s291 + $0x58] sm:$0xff]
    %v304 = vld [vmem:[%s291 + $0x60] sm:$0xff]
    %v305 = vld [vmem:[%s291 + $0x68] sm:$0xff]
    %v306 = vld [vmem:[%s291 + $0x70] sm:$0xff]
    %v307 = vld [vmem:[%s291 + $0x78] sm:$0xff]
    %v308 = vld [vmem:[%s291 + $0x80] sm:$0xff]
    %v309 = vld [vmem:[%s291 + $0x88] sm:$0xff]
    %v310 = vld [vmem:[%s291 + $0x90] sm:$0xff]
    %v311 = vld [vmem:[%s291 + $0x98] sm:$0xff]
    %v312 = vld [vmem:[%s291 + $0xa0] sm:$0xff]
    %v313 = vld [vmem:[%s291 + $0xa8] sm:$0xff]
    %v314 = vld [vmem:[%s291 + $0xb0] sm:$0xff]
    %v315 = vld [vmem:[%s291 + $0xb8] sm:$0xff]
    %v316 = vld [vmem:[%s291 + $0xc0] sm:$0xff]
    %v317 = vld [vmem:[%s291 + $0xc8] sm:$0xff]
    %v318 = vld [vmem:[%s291 + $0xd0] sm:$0xff]
    %v319 = vld [vmem:[%s291 + $0xd8] sm:$0xff]
    %v320 = vld [vmem:[%s291 + $0xe0] sm:$0xff]
    %v321 = vld [vmem:[%s291 + $0xe8] sm:$0xff]
    %v322 = vld [vmem:[%s291 + $0xf0] sm:$0xff]
    %v323 = vld [vmem:[%s291 + $0xf8] sm:$0xff]
    %v324 = vld [vmem:[%s291 + $0x100] sm:$0xff]
    %v325 = vld [vmem:[%s291 + $0x108] sm:$0xff]
    %v326 = vld [vmem:[%s291 + $0x110] sm:$0xff]
    %v327 = vld [vmem:[%s291 + $0x118] sm:$0xff]
    %v328 = vld [vmem:[%s291 + $0x120] sm:$0xff]
    %v329 = vld [vmem:[%s291 + $0x128] sm:$0xff]
    %v330 = vld [vmem:[%s291 + $0x130] sm:$0xff]
    %v331 = vld [vmem:[%s291 + $0x138] sm:$0xff]
    %v332 = vld [vmem:[%s291 + $0x140] sm:$0xff]
    %v333 = vld [vmem:[%s291 + $0x148] sm:$0xff]
    %v334 = vld [vmem:[%s291 + $0x150] sm:$0xff]
    %v335 = vld [vmem:[%s291 + $0x158] sm:$0xff]
    %v336 = vld [vmem:[%s291 + $0x160] sm:$0xff]
    %v337 = vld [vmem:[%s291 + $0x168] sm:$0xff]
    %v338 = vld [vmem:[%s291 + $0x170] sm:$0xff]
    %v339 = vld [vmem:[%s291 + $0x178] sm:$0xff]
    %v340 = vld [vmem:[%s291 + $0x180] sm:$0xff]
    %v341 = vld [vmem:[%s291 + $0x188] sm:$0xff]
    %v342 = vld [vmem:[%s291 + $0x190] sm:$0xff]
    %v343 = vld [vmem:[%s291 + $0x198] sm:$0xff]
    %v344 = vld [vmem:[%s291 + $0x1a0] sm:$0xff]
    %v345 = vld [vmem:[%s291 + $0x1a8] sm:$0xff]
    %v346 = vld [vmem:[%s291 + $0x1b0] sm:$0xff]
    %v347 = vld [vmem:[%s291 + $0x1b8] sm:$0xff]
    %v348 = vld [vmem:[%s291 + $0x1c0] sm:$0xff]
    %v349 = vld [vmem:[%s291 + $0x1c8] sm:$0xff]
    %v350 = vld [vmem:[%s291 + $0x1d0] sm:$0xff]
    %v351 = vld [vmem:[%s291 + $0x1d8] sm:$0xff]
    %v352 = vld [vmem:[%s291 + $0x1e0] sm:$0xff]
    %v353 = vld [vmem:[%s291 + $0x1e8] sm:$0xff]
    %v354 = vld [vmem:[%s291 + $0x1f0] sm:$0xff]
    %v355 = vld [vmem:[%s291 + $0x1f8] sm:$0xff]
    %v356 = vadd.f32 %v235, %v241
    %v357 = vadd.f32 %v236, %v242
    %v358 = vadd.f32 %v283, %v289
    %v359 = vadd.f32 %v284, %v290
    %360 = vmatprep.subr.mxu0 %v63
    %361 = vmatpush1.msra.mxu0 %v62
    %362 = vmatprep.subr.mxu0 %v65
    %363 = vmatpush1.msra.mxu0 %v64
    %364 = vmatprep.subr.mxu0 %v67
    %365 = vmatpush1.msra.mxu0 %v66
    %366 = vmatprep.subr.mxu0 %v69
    %367 = vmatpush1.msra.mxu0 %v68
    %368 = vmatprep.subr.mxu0 %v71
    %369 = vmatpush1.msra.mxu0 %v70
    %370 = vmatprep.subr.mxu0 %v73
    %371 = vmatpush1.msra.mxu0 %v72
    %372 = vmatprep.subr.mxu0 %v75
    %373 = vmatpush1.msra.mxu0 %v74
    %374 = vmatprep.subr.mxu0 %v77
    %375 = vmatpush1.msra.mxu0 %v76
    %376 = vmatprep.subr.mxu0 %v79
    %377 = vmatpush1.msra.mxu0 %v78
    %378 = vmatprep.subr.mxu0 %v81
    %379 = vmatpush1.msra.mxu0 %v80
    %380 = vmatprep.subr.mxu0 %v83
    %381 = vmatpush1.msra.mxu0 %v82
    %382 = vmatprep.subr.mxu0 %v85
    %383 = vmatpush1.msra.mxu0 %v84
    %384 = vmatprep.subr.mxu0 %v87
    %385 = vmatpush1.msra.mxu0 %v86
    %386 = vmatprep.subr.mxu0 %v89
    %387 = vmatpush1.msra.mxu0 %v88
    %388 = vmatprep.subr.mxu0 %v91
    %389 = vmatpush1.msra.mxu0 %v90
    %390 = vmatprep.subr.mxu0 %v93
    %391 = vmatpush1.msra.mxu0 %v92
    %392 = vmatprep.subr.mxu0 %v95
    %393 = vmatpush1.msra.mxu0 %v94
    %394 = vmatprep.subr.mxu0 %v97
    %395 = vmatpush1.msra.mxu0 %v96
    %396 = vmatprep.subr.mxu0 %v99
    %397 = vmatpush1.msra.mxu0 %v98
    %398 = vmatprep.subr.mxu0 %v101
    %399 = vmatpush1.msra.mxu0 %v100
    %400 = vmatprep.subr.mxu0 %v103
    %401 = vmatpush1.msra.mxu0 %v102
    %402 = vmatprep.subr.mxu0 %v105
    %403 = vmatpush1.msra.mxu0 %v104
    %404 = vmatprep.subr.mxu0 %v107
    %405 = vmatpush1.msra.mxu0 %v106
    %406 = vmatprep.subr.mxu0 %v109
    %407 = vmatpush1.msra.mxu0 %v108
    %408 = vmatprep.subr.mxu0 %v111
    %409 = vmatpush1.msra.mxu0 %v110
    %410 = vmatprep.subr.mxu0 %v113
    %411 = vmatpush1.msra.mxu0 %v112
    %412 = vmatprep.subr.mxu0 %v115
    %413 = vmatpush1.msra.mxu0 %v114
    %414 = vmatprep.subr.mxu0 %v117
    %415 = vmatpush1.msra.mxu0 %v116
    %416 = vmatprep.subr.mxu0 %v119
    %417 = vmatpush1.msra.mxu0 %v118
    %418 = vmatprep.subr.mxu0 %v121
    %419 = vmatpush1.msra.mxu0 %v120
    %420 = vmatprep.subr.mxu0 %v123
    %421 = vmatpush1.msra.mxu0 %v122
    %422 = vmatprep.subr.mxu0 %v125
    %423 = vmatpush1.msra.mxu0 %v124
    %424 = vmatprep.mubr.f32.mxu0 %v236
    %425 = vmatmul.mubr.f32.gmra.mrb[0].mxu0 %v235
    %v426 = vpop.f32.mrb[0].mxu0
    %v427 = vadd.f32 0.0, %v426
    %v428 = vpop.f32.mrb[0].mxu0
    %v429 = vadd.f32 0.0, %v428
    %430 = vmatprep.mubr.f32.mxu0 %v284
    %431 = vmatmul.mubr.f32.gmra.mrb[0].mxu0 %v283
    %v432 = vpop.f32.mrb[0].mxu0
    %v433 = vadd.f32 0.0, %v432
    %v434 = vpop.f32.mrb[0].mxu0
    %v435 = vadd.f32 0.0, %v434
    %436 = vdwg.mxu0
    %437 = vmatprep.subr.mxu0 %v128
    %438 = vmatpush1.msra.mxu0 %v127
    %439 = vmatprep.subr.mxu0 %v130
    %440 = vmatpush1.msra.mxu0 %v129
    %441 = vmatprep.subr.mxu0 %v132
    %442 = vmatpush1.msra.mxu0 %v131
    %443 = vmatprep.subr.mxu0 %v134
    %444 = vmatpush1.msra.mxu0 %v133
    %445 = vmatprep.subr.mxu0 %v136
    %446 = vmatpush1.msra.mxu0 %v135
    %447 = vmatprep.subr.mxu0 %v138
    %448 = vmatpush1.msra.mxu0 %v137
    %449 = vmatprep.subr.mxu0 %v140
    %450 = vmatpush1.msra.mxu0 %v139
    %451 = vmatprep.subr.mxu0 %v142
    %452 = vmatpush1.msra.mxu0 %v141
    %453 = vmatprep.subr.mxu0 %v144
    %454 = vmatpush1.msra.mxu0 %v143
    %455 = vmatprep.subr.mxu0 %v146
    %456 = vmatpush1.msra.mxu0 %v145
    %457 = vmatprep.subr.mxu0 %v148
    %458 = vmatpush1.msra.mxu0 %v147
    %459 = vmatprep.subr.mxu0 %v150
    %460 = vmatpush1.msra.mxu0 %v149
    %461 = vmatprep.subr.mxu0 %v152
    %462 = vmatpush1.msra.mxu0 %v151
    %463 = vmatprep.subr.mxu0 %v154
    %464 = vmatpush1.msra.mxu0 %v153
    %465 = vmatprep.subr.mxu0 %v156
    %466 = vmatpush1.msra.mxu0 %v155
    %467 = vmatprep.subr.mxu0 %v158
    %468 = vmatpush1.msra.mxu0 %v157
    %469 = vmatprep.subr.mxu0 %v160
    %470 = vmatpush1.msra.mxu0 %v159
    %471 = vmatprep.subr.mxu0 %v162
    %472 = vmatpush1.msra.mxu0 %v161
    %473 = vmatprep.subr.mxu0 %v164
    %474 = vmatpush1.msra.mxu0 %v163
    %475 = vmatprep.subr.mxu0 %v166
    %476 = vmatpush1.msra.mxu0 %v165
    %477 = vmatprep.subr.mxu0 %v168
    %478 = vmatpush1.msra.mxu0 %v167
    %479 = vmatprep.subr.mxu0 %v170
    %480 = vmatpush1.msra.mxu0 %v169
    %481 = vmatprep.subr.mxu0 %v172
    %482 = vmatpush1.msra.mxu0 %v171
    %483 = vmatprep.subr.mxu0 %v174
    %484 = vmatpush1.msra.mxu0 %v173
    %485 = vmatprep.subr.mxu0 %v176
    %486 = vmatpush1.msra.mxu0 %v175
    %487 = vmatprep.subr.mxu0 %v178
    %488 = vmatpush1.msra.mxu0 %v177
    %489 = vmatprep.subr.mxu0 %v180
    %490 = vmatpush1.msra.mxu0 %v179
    %491 = vmatprep.subr.mxu0 %v182
    %492 = vmatpush1.msra.mxu0 %v181
    %493 = vmatprep.subr.mxu0 %v184
    %494 = vmatpush1.msra.mxu0 %v183
    %495 = vmatprep.subr.mxu0 %v186
    %496 = vmatpush1.msra.mxu0 %v185
    %497 = vmatprep.subr.mxu0 %v188
    %498 = vmatpush1.msra.mxu0 %v187
    %499 = vmatprep.subr.mxu0 %v190
    %500 = vmatpush1.msra.mxu0 %v189
    %501 = vmatprep.mubr.f32.mxu0 %v242
    %502 = vmatmul.mubr.f32.gmra.mrb[0].mxu0 %v241
    %v503 = vpop.f32.mrb[0].mxu0
    %v504 = vadd.f32 0.0, %v503
    %v505 = vpop.f32.mrb[0].mxu0
    %v506 = vadd.f32 0.0, %v505
    %507 = vmatprep.mubr.f32.mxu0 %v290
    %508 = vmatmul.mubr.f32.gmra.mrb[0].mxu0 %v289
    %v509 = vpop.f32.mrb[0].mxu0
    %v510 = vadd.f32 0.0, %v509
    %v511 = vpop.f32.mrb[0].mxu0
    %v512 = vadd.f32 0.0, %v511
    %513 = vdwg.mxu0
    %514 = vmatprep.subr.mxu0 %v293
    %515 = vmatpush1.msra.mxu0 %v292
    %516 = vmatprep.subr.mxu0 %v295
    %517 = vmatpush1.msra.mxu0 %v294
    %518 = vmatprep.subr.mxu0 %v297
    %519 = vmatpush1.msra.mxu0 %v296
    %520 = vmatprep.subr.mxu0 %v299
    %521 = vmatpush1.msra.mxu0 %v298
    %522 = vmatprep.subr.mxu0 %v301
    %523 = vmatpush1.msra.mxu0 %v300
    %524 = vmatprep.subr.mxu0 %v303
    %525 = vmatpush1.msra.mxu0 %v302
    %526 = vmatprep.subr.mxu0 %v305
    %527 = vmatpush1.msra.mxu0 %v304
    %528 = vmatprep.subr.mxu0 %v307
    %529 = vmatpush1.msra.mxu0 %v306
    %530 = vmatprep.subr.mxu0 %v309
    %531 = vmatpush1.msra.mxu0 %v308
    %532 = vmatprep.subr.mxu0 %v311
    %533 = vmatpush1.msra.mxu0 %v310
    %534 = vmatprep.subr.mxu0 %v313
    %535 = vmatpush1.msra.mxu0 %v312
    %536 = vmatprep.subr.mxu0 %v315
    %537 = vmatpush1.msra.mxu0 %v314
    %538 = vmatprep.subr.mxu0 %v317
    %539 = vmatpush1.msra.mxu0 %v316
    %540 = vmatprep.subr.mxu0 %v319
    %541 = vmatpush1.msra.mxu0 %v318
    %542 = vmatprep.subr.mxu0 %v321
    %543 = vmatpush1.msra.mxu0 %v320
    %544 = vmatprep.subr.mxu0 %v323
    %545 = vmatpush1.msra.mxu0 %v322
    %546 = vmatprep.subr.mxu0 %v325
    %547 = vmatpush1.msra.mxu0 %v324
    %548 = vmatprep.subr.mxu0 %v327
    %549 = vmatpush1.msra.mxu0 %v326
    %550 = vmatprep.subr.mxu0 %v329
    %551 = vmatpush1.msra.mxu0 %v328
    %552 = vmatprep.subr.mxu0 %v331
    %553 = vmatpush1.msra.mxu0 %v330
    %554 = vmatprep.subr.mxu0 %v333
    %555 = vmatpush1.msra.mxu0 %v332
    %556 = vmatprep.subr.mxu0 %v335
    %557 = vmatpush1.msra.mxu0 %v334
    %558 = vmatprep.subr.mxu0 %v337
    %559 = vmatpush1.msra.mxu0 %v336
    %560 = vmatprep.subr.mxu0 %v339
    %561 = vmatpush1.msra.mxu0 %v338
    %562 = vmatprep.subr.mxu0 %v341
    %563 = vmatpush1.msra.mxu0 %v340
    %564 = vmatprep.subr.mxu0 %v343
    %565 = vmatpush1.msra.mxu0 %v342
    %566 = vmatprep.subr.mxu0 %v345
    %567 = vmatpush1.msra.mxu0 %v344
    %568 = vmatprep.subr.mxu0 %v347
    %569 = vmatpush1.msra.mxu0 %v346
    %570 = vmatprep.subr.mxu0 %v349
    %571 = vmatpush1.msra.mxu0 %v348
    %572 = vmatprep.subr.mxu0 %v351
    %573 = vmatpush1.msra.mxu0 %v350
    %574 = vmatprep.subr.mxu0 %v353
    %575 = vmatpush1.msra.mxu0 %v352
    %576 = vmatprep.subr.mxu0 %v355
    %577 = vmatpush1.msra.mxu0 %v354
    %578 = vmatprep.mubr.f32.mxu0 %v357
    %579 = vmatmul.mubr.f32.gmra.mrb[0].mxu0 %v356
    %v580 = vpop.f32.mrb[0].mxu0
    %v581 = vadd.f32 0.0, %v580
    %v582 = vpop.f32.mrb[0].mxu0
    %v583 = vadd.f32 0.0, %v582
    %584 = vmatprep.mubr.f32.mxu0 %v359
    %585 = vmatmul.mubr.f32.gmra.mrb[0].mxu0 %v358
    %v586 = vpop.f32.mrb[0].mxu0
    %v587 = vadd.f32 0.0, %v586
    %v588 = vpop.f32.mrb[0].mxu0
    %v589 = vadd.f32 0.0, %v588
    %590 = vdwg.mxu0
    %v591 = vsub.f32 %v427, %v504
    %v592 = vsub.f32 %v429, %v506
    %v593 = vsub.f32 %v433, %v510
    %v594 = vsub.f32 %v435, %v512
    %v595 = vsub.f32 %v581, %v427
    %v596 = vsub.f32 %v583, %v429
    %v597 = vsub.f32 %v587, %v433
    %v598 = vsub.f32 %v589, %v435
    %v599 = vsub.f32 %v595, %v504
    %v600 = vsub.f32 %v596, %v506
    %v601 = vsub.f32 %v597, %v510
    %v602 = vsub.f32 %v598, %v512
    %v603 = vmul.f32 %v591, %v591
    %v604 = vmul.f32 %v592, %v592
    %v605 = vmul.f32 %v593, %v593
    %v606 = vmul.f32 %v594, %v594
    %v607 = vmul.f32 %v599, %v599
    %v608 = vmul.f32 %v600, %v600
    %v609 = vmul.f32 %v601, %v601
    %v610 = vmul.f32 %v602, %v602
    %v611 = vadd.f32 %v603, %v607
    %v612 = vadd.f32 %v604, %v608
    %v613 = vadd.f32 %v605, %v609
    %v614 = vadd.f32 %v606, %v610
    %v615 = vadd.f32 %v611, %v613
    %v616 = vadd.f32 %v612, %v614
    %617 = vst [vmem:[#allocation8] sm:$0xff] %v615
    %618 = vst [vmem:[#allocation8 + $0x8] sm:$0xff] %v616
    // Predicated region
    $region34: #{tpu_custom_call.1} parent=1 // pred_check
      _
    $region35: #{tpu_custom_call.1} parent=1 // pred_check_branch
      %620 = sbr.rel (0) target = $region37
    $region36: #{tpu_custom_call.1} parent=1 // pred_region
      %s622 = ssub.s32 256, 256
      %623 = vsyncadd [#allocation4], %s622
      %s625 = sshll.u32 [#allocation8], 4
      %s626 = int_to_ptr.vmem [resolvable:$true] %s625
      %628 = dma.vmem_to_hbm [thread:$0]  %s626, 256, %s5, [#allocation4]
    $region37: #{tpu_custom_call.1} parent=1 // pred_fallthru
      _
    // Predicated region
    $region38: #{tpu_custom_call.1} parent=1 // pred_check
      _
    $region39: #{tpu_custom_call.1} parent=1 // pred_check_branch
      %630 = sbr.rel (0) target = $region41
    $region40: #{tpu_custom_call.1} parent=1 // pred_region
      %631 = dma.done [#allocation4], 256
    $region41: #{tpu_custom_call.1} parent=1 // pred_fallthru
      _
    %632 = vsyncpa [#allocation3], 1
    %633 = vsyncpa [#allocation6], 1
    %634 = vsyncpa [#allocation4], 1

// kernel: tpu_custom_call.1
$region0: #{tpu_custom_call.1}
  #allocation0 [shape = 'u32[]', space=smem, size = 0x4, offset = 0x4, fixed_abs, tag = 'smem constant byte address 0x4 - core index']
  #allocation1 [shape = 'u32[144,128]{1,0:T(1,128)}', space=vmem, size = 0x12000, scoped, tag = 'internal scratch']
  %s0 = inlined_call_operand.hbm [shape: f32[8,256], index: 0, kind: input, shape index: {}]
  %s1 = inlined_call_operand.hbm [shape: f32[8,256], index: 1, kind: input, shape index: {}]
  %s2 = inlined_call_operand.vmem [shape: f32[2,256], index: 2, kind: input, shape index: {}]
  %s3 = inlined_call_operand.vmem [shape: f32[2,256], index: 3, kind: input, shape index: {}]
  %s4 = inlined_call_operand.hbm [shape: f32[3,256,256], index: 4, kind: input, shape index: {}]
  %s5 = inlined_call_operand.hbm [shape: f32[8,256], index: 5, kind: output, shape index: {}]
  %s6 = sld [smem:[#allocation0]]
  $region42: #{tpu_custom_call.1} parent=0
    _
  %s8 = ssub.s32 1, %s6
  %s9 = scalar_select 0, %s8, %s6
  $region1: #{tpu_custom_call.1} parent=0
    #allocation2 [shape = 'u8[8192]{0}', space=vmem, size = 0x2000, scoped, tag = 'input window, operand 0, single buffered']
    #allocation3 [shape = 's32[1]{0}', space=sflag, size = 0x4, scoped, tag = 'scoped memory for tpu_custom_call.1']
    #allocation4 [shape = 's32[1]{0}', space=sflag, size = 0x4, scoped, tag = 'scoped memory for tpu_custom_call.1']
    #allocation5 [shape = 'u8[8192]{0}', space=vmem, size = 0x2000, scoped, tag = 'input window, operand 1, single buffered']
    #allocation6 [shape = 's32[1]{0}', space=sflag, size = 0x4, scoped, tag = 'scoped memory for tpu_custom_call.1']
    #allocation7 [shape = 'u8[786432]{0}', space=vmem, size = 0xc0000, scoped, tag = 'input window, operand 4, single buffered']
    #allocation8 [shape = 'u8[8192]{0}', space=vmem, size = 0x2000, scoped, tag = 'output window, operand 0, single buffered']
    %10 = vsyncpa [#allocation3], 0
    %11 = vsyncpa [#allocation6], 0
    %12 = vsyncpa [#allocation4], 0
    // Predicated region
    $region2: #{tpu_custom_call.1} parent=1 // pred_check
      _
    $region3: #{tpu_custom_call.1} parent=1 // pred_check_branch
      %14 = sbr.rel (0) target = $region5
    $region4: #{tpu_custom_call.1} parent=1 // pred_region
      %s16 = ssub.s32 256, 256
      %17 = vsyncadd [#allocation3], %s16
      %s19 = sshll.u32 [#allocation2], 4
      %s20 = int_to_ptr.vmem [resolvable:$true] %s19
      %22 = dma.hbm_to_vmem [thread:$0]  %s0, 256, %s20, [#allocation3]
    $region5: #{tpu_custom_call.1} parent=1 // pred_fallthru
      _
    // Predicated region
    $region6: #{tpu_custom_call.1} parent=1 // pred_check
      _
    $region7: #{tpu_custom_call.1} parent=1 // pred_check_branch
      %24 = sbr.rel (0) target = $region9
    $region8: #{tpu_custom_call.1} parent=1 // pred_region
      %s26 = ssub.s32 256, 256
      %27 = vsyncadd [#allocation6], %s26
      %s29 = sshll.u32 [#allocation5], 4
      %s30 = int_to_ptr.vmem [resolvable:$true] %s29
      %32 = dma.hbm_to_vmem [thread:$0]  %s1, 256, %s30, [#allocation6]
    $region9: #{tpu_custom_call.1} parent=1 // pred_fallthru
      _
    // Predicated region
    $region10: #{tpu_custom_call.1} parent=1 // pred_check
      _
    $region11: #{tpu_custom_call.1} parent=1 // pred_check_branch
      %34 = sbr.rel (0) target = $region13
    $region12: #{tpu_custom_call.1} parent=1 // pred_region
      _
    $region13: #{tpu_custom_call.1} parent=1 // pred_fallthru
      _
    // Predicated region
    $region14: #{tpu_custom_call.1} parent=1 // pred_check
      _
    $region15: #{tpu_custom_call.1} parent=1 // pred_check_branch
      %36 = sbr.rel (0) target = $region17
    $region16: #{tpu_custom_call.1} parent=1 // pred_region
      _
    $region17: #{tpu_custom_call.1} parent=1 // pred_fallthru
      _
    // Predicated region
    $region18: #{tpu_custom_call.1} parent=1 // pred_check
      _
    $region19: #{tpu_custom_call.1} parent=1 // pred_check_branch
      %38 = sbr.rel (0) target = $region21
    $region20: #{tpu_custom_call.1} parent=1 // pred_region
      %s40 = ssub.s32 24576, 24576
      %41 = vsyncadd [#allocation6], %s40
      %s42 = sshll.u32 [#allocation7], 4
      %s43 = int_to_ptr.vmem [resolvable:$true] %s42
      %48 = dma.hbm_to_vmem [thread:$0]  %s4, 24576, %s43, [#allocation6], 256, 256, 16
    $region21: #{tpu_custom_call.1} parent=1 // pred_fallthru
      _
    // Predicated region
    $region22: #{tpu_custom_call.1} parent=1 // pred_check
      _
    $region23: #{tpu_custom_call.1} parent=1 // pred_check_branch
      %50 = sbr.rel (0) target = $region25
    $region24: #{tpu_custom_call.1} parent=1 // pred_region
      %51 = dma.done [#allocation3], 256
    $region25: #{tpu_custom_call.1} parent=1 // pred_fallthru
      _
    // Predicated region
    $region26: #{tpu_custom_call.1} parent=1 // pred_check
      _
    $region27: #{tpu_custom_call.1} parent=1 // pred_check_branch
      %53 = sbr.rel (0) target = $region29
    $region28: #{tpu_custom_call.1} parent=1 // pred_region
      %54 = dma.done [#allocation6], 256
    $region29: #{tpu_custom_call.1} parent=1 // pred_fallthru
      _
    // Predicated region
    $region30: #{tpu_custom_call.1} parent=1 // pred_check
      _
    $region31: #{tpu_custom_call.1} parent=1 // pred_check_branch
      %56 = sbr.rel (0) target = $region33
    $region32: #{tpu_custom_call.1} parent=1 // pred_region
      %57 = dma.done [#allocation6], 24576
    $region33: #{tpu_custom_call.1} parent=1 // pred_fallthru
      _
    %v58 = vld [vmem:[#allocation2] sm:$0xff]
    %v59 = vld [vmem:[#allocation2 + $0x8] sm:$0xff]
    %v60 = vld [vmem:[#allocation5] sm:$0xff]
    %v61 = vld [vmem:[#allocation5 + $0x8] sm:$0xff]
    %v62 = vld [vmem:[#allocation7] sm:$0xff]
    %v63 = vld [vmem:[#allocation7 + $0x8] sm:$0xff]
    %v64 = vld [vmem:[#allocation7 + $0x10] sm:$0xff]
    %v65 = vld [vmem:[#allocation7 + $0x18] sm:$0xff]
    %v66 = vld [vmem:[#allocation7 + $0x20] sm:$0xff]
    %v67 = vld [vmem:[#allocation7 + $0x28] sm:$0xff]
    %v68 = vld [vmem:[#allocation7 + $0x30] sm:$0xff]
    %v69 = vld [vmem:[#allocation7 + $0x38] sm:$0xff]
    %v70 = vld [vmem:[#allocation7 + $0x40] sm:$0xff]
    %v71 = vld [vmem:[#allocation7 + $0x48] sm:$0xff]
    %v72 = vld [vmem:[#allocation7 + $0x50] sm:$0xff]
    %v73 = vld [vmem:[#allocation7 + $0x58] sm:$0xff]
    %v74 = vld [vmem:[#allocation7 + $0x60] sm:$0xff]
    %v75 = vld [vmem:[#allocation7 + $0x68] sm:$0xff]
    %v76 = vld [vmem:[#allocation7 + $0x70] sm:$0xff]
    %v77 = vld [vmem:[#allocation7 + $0x78] sm:$0xff]
    %v78 = vld [vmem:[#allocation7 + $0x80] sm:$0xff]
    %v79 = vld [vmem:[#allocation7 + $0x88] sm:$0xff]
    %v80 = vld [vmem:[#allocation7 + $0x90] sm:$0xff]
    %v81 = vld [vmem:[#allocation7 + $0x98] sm:$0xff]
    %v82 = vld [vmem:[#allocation7 + $0xa0] sm:$0xff]
    %v83 = vld [vmem:[#allocation7 + $0xa8] sm:$0xff]
    %v84 = vld [vmem:[#allocation7 + $0xb0] sm:$0xff]
    %v85 = vld [vmem:[#allocation7 + $0xb8] sm:$0xff]
    %v86 = vld [vmem:[#allocation7 + $0xc0] sm:$0xff]
    %v87 = vld [vmem:[#allocation7 + $0xc8] sm:$0xff]
    %v88 = vld [vmem:[#allocation7 + $0xd0] sm:$0xff]
    %v89 = vld [vmem:[#allocation7 + $0xd8] sm:$0xff]
    %v90 = vld [vmem:[#allocation7 + $0xe0] sm:$0xff]
    %v91 = vld [vmem:[#allocation7 + $0xe8] sm:$0xff]
    %v92 = vld [vmem:[#allocation7 + $0xf0] sm:$0xff]
    %v93 = vld [vmem:[#allocation7 + $0xf8] sm:$0xff]
    %v94 = vld [vmem:[#allocation7 + $0x100] sm:$0xff]
    %v95 = vld [vmem:[#allocation7 + $0x108] sm:$0xff]
    %v96 = vld [vmem:[#allocation7 + $0x110] sm:$0xff]
    %v97 = vld [vmem:[#allocation7 + $0x118] sm:$0xff]
    %v98 = vld [vmem:[#allocation7 + $0x120] sm:$0xff]
    %v99 = vld [vmem:[#allocation7 + $0x128] sm:$0xff]
    %v100 = vld [vmem:[#allocation7 + $0x130] sm:$0xff]
    %v101 = vld [vmem:[#allocation7 + $0x138] sm:$0xff]
    %v102 = vld [vmem:[#allocation7 + $0x140] sm:$0xff]
    %v103 = vld [vmem:[#allocation7 + $0x148] sm:$0xff]
    %v104 = vld [vmem:[#allocation7 + $0x150] sm:$0xff]
    %v105 = vld [vmem:[#allocation7 + $0x158] sm:$0xff]
    %v106 = vld [vmem:[#allocation7 + $0x160] sm:$0xff]
    %v107 = vld [vmem:[#allocation7 + $0x168] sm:$0xff]
    %v108 = vld [vmem:[#allocation7 + $0x170] sm:$0xff]
    %v109 = vld [vmem:[#allocation7 + $0x178] sm:$0xff]
    %v110 = vld [vmem:[#allocation7 + $0x180] sm:$0xff]
    %v111 = vld [vmem:[#allocation7 + $0x188] sm:$0xff]
    %v112 = vld [vmem:[#allocation7 + $0x190] sm:$0xff]
    %v113 = vld [vmem:[#allocation7 + $0x198] sm:$0xff]
    %v114 = vld [vmem:[#allocation7 + $0x1a0] sm:$0xff]
    %v115 = vld [vmem:[#allocation7 + $0x1a8] sm:$0xff]
    %v116 = vld [vmem:[#allocation7 + $0x1b0] sm:$0xff]
    %v117 = vld [vmem:[#allocation7 + $0x1b8] sm:$0xff]
    %v118 = vld [vmem:[#allocation7 + $0x1c0] sm:$0xff]
    %v119 = vld [vmem:[#allocation7 + $0x1c8] sm:$0xff]
    %v120 = vld [vmem:[#allocation7 + $0x1d0] sm:$0xff]
    %v121 = vld [vmem:[#allocation7 + $0x1d8] sm:$0xff]
    %v122 = vld [vmem:[#allocation7 + $0x1e0] sm:$0xff]
    %v123 = vld [vmem:[#allocation7 + $0x1e8] sm:$0xff]
    %v124 = vld [vmem:[#allocation7 + $0x1f0] sm:$0xff]
    %v125 = vld [vmem:[#allocation7 + $0x1f8] sm:$0xff]
    %s126 = scalar_lea.vmem [#allocation7], 512
    %v127 = vld [vmem:[%s126] sm:$0xff]
    %v128 = vld [vmem:[%s126 + $0x8] sm:$0xff]
    %v129 = vld [vmem:[%s126 + $0x10] sm:$0xff]
    %v130 = vld [vmem:[%s126 + $0x18] sm:$0xff]
    %v131 = vld [vmem:[%s126 + $0x20] sm:$0xff]
    %v132 = vld [vmem:[%s126 + $0x28] sm:$0xff]
    %v133 = vld [vmem:[%s126 + $0x30] sm:$0xff]
    %v134 = vld [vmem:[%s126 + $0x38] sm:$0xff]
    %v135 = vld [vmem:[%s126 + $0x40] sm:$0xff]
    %v136 = vld [vmem:[%s126 + $0x48] sm:$0xff]
    %v137 = vld [vmem:[%s126 + $0x50] sm:$0xff]
    %v138 = vld [vmem:[%s126 + $0x58] sm:$0xff]
    %v139 = vld [vmem:[%s126 + $0x60] sm:$0xff]
    %v140 = vld [vmem:[%s126 + $0x68] sm:$0xff]
    %v141 = vld [vmem:[%s126 + $0x70] sm:$0xff]
    %v142 = vld [vmem:[%s126 + $0x78] sm:$0xff]
    %v143 = vld [vmem:[%s126 + $0x80] sm:$0xff]
    %v144 = vld [vmem:[%s126 + $0x88] sm:$0xff]
    %v145 = vld [vmem:[%s126 + $0x90] sm:$0xff]
    %v146 = vld [vmem:[%s126 + $0x98] sm:$0xff]
    %v147 = vld [vmem:[%s126 + $0xa0] sm:$0xff]
    %v148 = vld [vmem:[%s126 + $0xa8] sm:$0xff]
    %v149 = vld [vmem:[%s126 + $0xb0] sm:$0xff]
    %v150 = vld [vmem:[%s126 + $0xb8] sm:$0xff]
    %v151 = vld [vmem:[%s126 + $0xc0] sm:$0xff]
    %v152 = vld [vmem:[%s126 + $0xc8] sm:$0xff]
    %v153 = vld [vmem:[%s126 + $0xd0] sm:$0xff]
    %v154 = vld [vmem:[%s126 + $0xd8] sm:$0xff]
    %v155 = vld [vmem:[%s126 + $0xe0] sm:$0xff]
    %v156 = vld [vmem:[%s126 + $0xe8] sm:$0xff]
    %v157 = vld [vmem:[%s126 + $0xf0] sm:$0xff]
    %v158 = vld [vmem:[%s126 + $0xf8] sm:$0xff]
    %v159 = vld [vmem:[%s126 + $0x100] sm:$0xff]
    %v160 = vld [vmem:[%s126 + $0x108] sm:$0xff]
    %v161 = vld [vmem:[%s126 + $0x110] sm:$0xff]
    %v162 = vld [vmem:[%s126 + $0x118] sm:$0xff]
    %v163 = vld [vmem:[%s126 + $0x120] sm:$0xff]
    %v164 = vld [vmem:[%s126 + $0x128] sm:$0xff]
    %v165 = vld [vmem:[%s126 + $0x130] sm:$0xff]
    %v166 = vld [vmem:[%s126 + $0x138] sm:$0xff]
    %v167 = vld [vmem:[%s126 + $0x140] sm:$0xff]
    %v168 = vld [vmem:[%s126 + $0x148] sm:$0xff]
    %v169 = vld [vmem:[%s126 + $0x150] sm:$0xff]
    %v170 = vld [vmem:[%s126 + $0x158] sm:$0xff]
    %v171 = vld [vmem:[%s126 + $0x160] sm:$0xff]
    %v172 = vld [vmem:[%s126 + $0x168] sm:$0xff]
    %v173 = vld [vmem:[%s126 + $0x170] sm:$0xff]
    %v174 = vld [vmem:[%s126 + $0x178] sm:$0xff]
    %v175 = vld [vmem:[%s126 + $0x180] sm:$0xff]
    %v176 = vld [vmem:[%s126 + $0x188] sm:$0xff]
    %v177 = vld [vmem:[%s126 + $0x190] sm:$0xff]
    %v178 = vld [vmem:[%s126 + $0x198] sm:$0xff]
    %v179 = vld [vmem:[%s126 + $0x1a0] sm:$0xff]
    %v180 = vld [vmem:[%s126 + $0x1a8] sm:$0xff]
    %v181 = vld [vmem:[%s126 + $0x1b0] sm:$0xff]
    %v182 = vld [vmem:[%s126 + $0x1b8] sm:$0xff]
    %v183 = vld [vmem:[%s126 + $0x1c0] sm:$0xff]
    %v184 = vld [vmem:[%s126 + $0x1c8] sm:$0xff]
    %v185 = vld [vmem:[%s126 + $0x1d0] sm:$0xff]
    %v186 = vld [vmem:[%s126 + $0x1d8] sm:$0xff]
    %v187 = vld [vmem:[%s126 + $0x1e0] sm:$0xff]
    %v188 = vld [vmem:[%s126 + $0x1e8] sm:$0xff]
    %v189 = vld [vmem:[%s126 + $0x1f0] sm:$0xff]
    %v190 = vld [vmem:[%s126 + $0x1f8] sm:$0xff]
    %v191 = vld [vmem:[%s2] sm:$0xf]
    %v192 = vld [vmem:[%s3] sm:$0xf]
    %v194 = vlaneseq
    %v195 = vshrl.u32 %v194, 7
    %v196 = vsub.s32 0, %v195
    %v197 = vrot.slane %v191, %v196
    %v198 = vlaneseq
    %v199 = vshrl.u32 %v198, 7
    %v200 = vsub.s32 2, %v199
    %v201 = vrot.slane %v191, %v200
    %v204 = vlaneseq
    %v205 = vshrl.u32 %v204, 7
    %v206 = vsub.s32 0, %v205
    %v207 = vrot.slane %v197, %v206
    %v208 = vlaneseq
    %v209 = vshrl.u32 %v208, 7
    %v210 = vsub.s32 0, %v209
    %v211 = vrot.slane %v201, %v210
    %v212 = vmul.f32 %v207, %v58
    %v213 = vmul.f32 %v211, %v59
    %v215 = vlaneseq
    %v216 = vshrl.u32 %v215, 7
    %v217 = vsub.s32 0, %v216
    %v218 = vrot.slane %v192, %v217
    %v219 = vlaneseq
    %v220 = vshrl.u32 %v219, 7
    %v221 = vsub.s32 2, %v220
    %v222 = vrot.slane %v192, %v221
    %v225 = vlaneseq
    %v226 = vshrl.u32 %v225, 7
    %v227 = vsub.s32 0, %v226
    %v228 = vrot.slane %v218, %v227
    %v229 = vlaneseq
    %v230 = vshrl.u32 %v229, 7
    %v231 = vsub.s32 0, %v230
    %v232 = vrot.slane %v222, %v231
    %v233 = vmul.f32 %v228, %v60
    %v234 = vmul.f32 %v232, %v61
    %v235 = vsub.f32 %v212, %v233
    %v236 = vsub.f32 %v213, %v234
    %v237 = vmul.f32 %v207, %v60
    %v238 = vmul.f32 %v211, %v61
    %v239 = vmul.f32 %v228, %v58
    %v240 = vmul.f32 %v232, %v59
    %v241 = vadd.f32 %v237, %v239
    %v242 = vadd.f32 %v238, %v240
    %v243 = vlaneseq
    %v244 = vshrl.u32 %v243, 7
    %v245 = vsub.s32 1, %v244
    %v246 = vrot.slane %v191, %v245
    %v247 = vlaneseq
    %v248 = vshrl.u32 %v247, 7
    %v249 = vsub.s32 3, %v248
    %v250 = vrot.slane %v191, %v249
    %v253 = vlaneseq
    %v254 = vshrl.u32 %v253, 7
    %v255 = vsub.s32 1, %v254
    %v256 = vrot.slane %v246, %v255
    %v257 = vlaneseq
    %v258 = vshrl.u32 %v257, 7
    %v259 = vsub.s32 1, %v258
    %v260 = vrot.slane %v250, %v259
    %v261 = vmul.f32 %v256, %v58
    %v262 = vmul.f32 %v260, %v59
    %v263 = vlaneseq
    %v264 = vshrl.u32 %v263, 7
    %v265 = vsub.s32 1, %v264
    %v266 = vrot.slane %v192, %v265
    %v267 = vlaneseq
    %v268 = vshrl.u32 %v267, 7
    %v269 = vsub.s32 3, %v268
    %v270 = vrot.slane %v192, %v269
    %v273 = vlaneseq
    %v274 = vshrl.u32 %v273, 7
    %v275 = vsub.s32 1, %v274
    %v276 = vrot.slane %v266, %v275
    %v277 = vlaneseq
    %v278 = vshrl.u32 %v277, 7
    %v279 = vsub.s32 1, %v278
    %v280 = vrot.slane %v270, %v279
    %v281 = vmul.f32 %v276, %v60
    %v282 = vmul.f32 %v280, %v61
    %v283 = vsub.f32 %v261, %v281
    %v284 = vsub.f32 %v262, %v282
    %v285 = vmul.f32 %v256, %v60
    %v286 = vmul.f32 %v260, %v61
    %v287 = vmul.f32 %v276, %v58
    %v288 = vmul.f32 %v280, %v59
    %v289 = vadd.f32 %v285, %v287
    %v290 = vadd.f32 %v286, %v288
    %s291 = scalar_lea.vmem [#allocation7], 1024
    %v292 = vld [vmem:[%s291] sm:$0xff]
    %v293 = vld [vmem:[%s291 + $0x8] sm:$0xff]
    %v294 = vld [vmem:[%s291 + $0x10] sm:$0xff]
    %v295 = vld [vmem:[%s291 + $0x18] sm:$0xff]
    %v296 = vld [vmem:[%s291 + $0x20] sm:$0xff]
    %v297 = vld [vmem:[%s291 + $0x28] sm:$0xff]
    %v298 = vld [vmem:[%s291 + $0x30] sm:$0xff]
    %v299 = vld [vmem:[%s291 + $0x38] sm:$0xff]
    %v300 = vld [vmem:[%s291 + $0x40] sm:$0xff]
    %v301 = vld [vmem:[%s291 + $0x48] sm:$0xff]
    %v302 = vld [vmem:[%s291 + $0x50] sm:$0xff]
    %v303 = vld [vmem:[%s291 + $0x58] sm:$0xff]
    %v304 = vld [vmem:[%s291 + $0x60] sm:$0xff]
    %v305 = vld [vmem:[%s291 + $0x68] sm:$0xff]
    %v306 = vld [vmem:[%s291 + $0x70] sm:$0xff]
    %v307 = vld [vmem:[%s291 + $0x78] sm:$0xff]
    %v308 = vld [vmem:[%s291 + $0x80] sm:$0xff]
    %v309 = vld [vmem:[%s291 + $0x88] sm:$0xff]
    %v310 = vld [vmem:[%s291 + $0x90] sm:$0xff]
    %v311 = vld [vmem:[%s291 + $0x98] sm:$0xff]
    %v312 = vld [vmem:[%s291 + $0xa0] sm:$0xff]
    %v313 = vld [vmem:[%s291 + $0xa8] sm:$0xff]
    %v314 = vld [vmem:[%s291 + $0xb0] sm:$0xff]
    %v315 = vld [vmem:[%s291 + $0xb8] sm:$0xff]
    %v316 = vld [vmem:[%s291 + $0xc0] sm:$0xff]
    %v317 = vld [vmem:[%s291 + $0xc8] sm:$0xff]
    %v318 = vld [vmem:[%s291 + $0xd0] sm:$0xff]
    %v319 = vld [vmem:[%s291 + $0xd8] sm:$0xff]
    %v320 = vld [vmem:[%s291 + $0xe0] sm:$0xff]
    %v321 = vld [vmem:[%s291 + $0xe8] sm:$0xff]
    %v322 = vld [vmem:[%s291 + $0xf0] sm:$0xff]
    %v323 = vld [vmem:[%s291 + $0xf8] sm:$0xff]
    %v324 = vld [vmem:[%s291 + $0x100] sm:$0xff]
    %v325 = vld [vmem:[%s291 + $0x108] sm:$0xff]
    %v326 = vld [vmem:[%s291 + $0x110] sm:$0xff]
    %v327 = vld [vmem:[%s291 + $0x118] sm:$0xff]
    %v328 = vld [vmem:[%s291 + $0x120] sm:$0xff]
    %v329 = vld [vmem:[%s291 + $0x128] sm:$0xff]
    %v330 = vld [vmem:[%s291 + $0x130] sm:$0xff]
    %v331 = vld [vmem:[%s291 + $0x138] sm:$0xff]
    %v332 = vld [vmem:[%s291 + $0x140] sm:$0xff]
    %v333 = vld [vmem:[%s291 + $0x148] sm:$0xff]
    %v334 = vld [vmem:[%s291 + $0x150] sm:$0xff]
    %v335 = vld [vmem:[%s291 + $0x158] sm:$0xff]
    %v336 = vld [vmem:[%s291 + $0x160] sm:$0xff]
    %v337 = vld [vmem:[%s291 + $0x168] sm:$0xff]
    %v338 = vld [vmem:[%s291 + $0x170] sm:$0xff]
    %v339 = vld [vmem:[%s291 + $0x178] sm:$0xff]
    %v340 = vld [vmem:[%s291 + $0x180] sm:$0xff]
    %v341 = vld [vmem:[%s291 + $0x188] sm:$0xff]
    %v342 = vld [vmem:[%s291 + $0x190] sm:$0xff]
    %v343 = vld [vmem:[%s291 + $0x198] sm:$0xff]
    %v344 = vld [vmem:[%s291 + $0x1a0] sm:$0xff]
    %v345 = vld [vmem:[%s291 + $0x1a8] sm:$0xff]
    %v346 = vld [vmem:[%s291 + $0x1b0] sm:$0xff]
    %v347 = vld [vmem:[%s291 + $0x1b8] sm:$0xff]
    %v348 = vld [vmem:[%s291 + $0x1c0] sm:$0xff]
    %v349 = vld [vmem:[%s291 + $0x1c8] sm:$0xff]
    %v350 = vld [vmem:[%s291 + $0x1d0] sm:$0xff]
    %v351 = vld [vmem:[%s291 + $0x1d8] sm:$0xff]
    %v352 = vld [vmem:[%s291 + $0x1e0] sm:$0xff]
    %v353 = vld [vmem:[%s291 + $0x1e8] sm:$0xff]
    %v354 = vld [vmem:[%s291 + $0x1f0] sm:$0xff]
    %v355 = vld [vmem:[%s291 + $0x1f8] sm:$0xff]
    %v356 = vadd.f32 %v235, %v241
    %v357 = vadd.f32 %v236, %v242
    %v358 = vadd.f32 %v283, %v289
    %v359 = vadd.f32 %v284, %v290
    %360 = vmatprep.subr.mxu0 %v63
    %361 = vmatpush1.msra.mxu0 %v62
    %362 = vmatprep.subr.mxu0 %v65
    %363 = vmatpush1.msra.mxu0 %v64
    %364 = vmatprep.subr.mxu0 %v67
    %365 = vmatpush1.msra.mxu0 %v66
    %366 = vmatprep.subr.mxu0 %v69
    %367 = vmatpush1.msra.mxu0 %v68
    %368 = vmatprep.subr.mxu0 %v71
    %369 = vmatpush1.msra.mxu0 %v70
    %370 = vmatprep.subr.mxu0 %v73
    %371 = vmatpush1.msra.mxu0 %v72
    %372 = vmatprep.subr.mxu0 %v75
    %373 = vmatpush1.msra.mxu0 %v74
    %374 = vmatprep.subr.mxu0 %v77
    %375 = vmatpush1.msra.mxu0 %v76
    %376 = vmatprep.subr.mxu0 %v79
    %377 = vmatpush1.msra.mxu0 %v78
    %378 = vmatprep.subr.mxu0 %v81
    %379 = vmatpush1.msra.mxu0 %v80
    %380 = vmatprep.subr.mxu0 %v83
    %381 = vmatpush1.msra.mxu0 %v82
    %382 = vmatprep.subr.mxu0 %v85
    %383 = vmatpush1.msra.mxu0 %v84
    %384 = vmatprep.subr.mxu0 %v87
    %385 = vmatpush1.msra.mxu0 %v86
    %386 = vmatprep.subr.mxu0 %v89
    %387 = vmatpush1.msra.mxu0 %v88
    %388 = vmatprep.subr.mxu0 %v91
    %389 = vmatpush1.msra.mxu0 %v90
    %390 = vmatprep.subr.mxu0 %v93
    %391 = vmatpush1.msra.mxu0 %v92
    %392 = vmatprep.subr.mxu0 %v95
    %393 = vmatpush1.msra.mxu0 %v94
    %394 = vmatprep.subr.mxu0 %v97
    %395 = vmatpush1.msra.mxu0 %v96
    %396 = vmatprep.subr.mxu0 %v99
    %397 = vmatpush1.msra.mxu0 %v98
    %398 = vmatprep.subr.mxu0 %v101
    %399 = vmatpush1.msra.mxu0 %v100
    %400 = vmatprep.subr.mxu0 %v103
    %401 = vmatpush1.msra.mxu0 %v102
    %402 = vmatprep.subr.mxu0 %v105
    %403 = vmatpush1.msra.mxu0 %v104
    %404 = vmatprep.subr.mxu0 %v107
    %405 = vmatpush1.msra.mxu0 %v106
    %406 = vmatprep.subr.mxu0 %v109
    %407 = vmatpush1.msra.mxu0 %v108
    %408 = vmatprep.subr.mxu0 %v111
    %409 = vmatpush1.msra.mxu0 %v110
    %410 = vmatprep.subr.mxu0 %v113
    %411 = vmatpush1.msra.mxu0 %v112
    %412 = vmatprep.subr.mxu0 %v115
    %413 = vmatpush1.msra.mxu0 %v114
    %414 = vmatprep.subr.mxu0 %v117
    %415 = vmatpush1.msra.mxu0 %v116
    %416 = vmatprep.subr.mxu0 %v119
    %417 = vmatpush1.msra.mxu0 %v118
    %418 = vmatprep.subr.mxu0 %v121
    %419 = vmatpush1.msra.mxu0 %v120
    %420 = vmatprep.subr.mxu0 %v123
    %421 = vmatpush1.msra.mxu0 %v122
    %422 = vmatprep.subr.mxu0 %v125
    %423 = vmatpush1.msra.mxu0 %v124
    %424 = vmatprep.mubr.f32.mxu0 %v236
    %425 = vmatmul.mubr.f32.gmra.mrb[0].mxu0 %v235
    %v426 = vpop.f32.mrb[0].mxu0
    %v427 = vadd.f32 0.0, %v426
    %v428 = vpop.f32.mrb[0].mxu0
    %v429 = vadd.f32 0.0, %v428
    %430 = vmatprep.mubr.f32.mxu0 %v284
    %431 = vmatmul.mubr.f32.gmra.mrb[0].mxu0 %v283
    %v432 = vpop.f32.mrb[0].mxu0
    %v433 = vadd.f32 0.0, %v432
    %v434 = vpop.f32.mrb[0].mxu0
    %v435 = vadd.f32 0.0, %v434
    %436 = vdwg.mxu0
    %437 = vmatprep.subr.mxu0 %v128
    %438 = vmatpush1.msra.mxu0 %v127
    %439 = vmatprep.subr.mxu0 %v130
    %440 = vmatpush1.msra.mxu0 %v129
    %441 = vmatprep.subr.mxu0 %v132
    %442 = vmatpush1.msra.mxu0 %v131
    %443 = vmatprep.subr.mxu0 %v134
    %444 = vmatpush1.msra.mxu0 %v133
    %445 = vmatprep.subr.mxu0 %v136
    %446 = vmatpush1.msra.mxu0 %v135
    %447 = vmatprep.subr.mxu0 %v138
    %448 = vmatpush1.msra.mxu0 %v137
    %449 = vmatprep.subr.mxu0 %v140
    %450 = vmatpush1.msra.mxu0 %v139
    %451 = vmatprep.subr.mxu0 %v142
    %452 = vmatpush1.msra.mxu0 %v141
    %453 = vmatprep.subr.mxu0 %v144
    %454 = vmatpush1.msra.mxu0 %v143
    %455 = vmatprep.subr.mxu0 %v146
    %456 = vmatpush1.msra.mxu0 %v145
    %457 = vmatprep.subr.mxu0 %v148
    %458 = vmatpush1.msra.mxu0 %v147
    %459 = vmatprep.subr.mxu0 %v150
    %460 = vmatpush1.msra.mxu0 %v149
    %461 = vmatprep.subr.mxu0 %v152
    %462 = vmatpush1.msra.mxu0 %v151
    %463 = vmatprep.subr.mxu0 %v154
    %464 = vmatpush1.msra.mxu0 %v153
    %465 = vmatprep.subr.mxu0 %v156
    %466 = vmatpush1.msra.mxu0 %v155
    %467 = vmatprep.subr.mxu0 %v158
    %468 = vmatpush1.msra.mxu0 %v157
    %469 = vmatprep.subr.mxu0 %v160
    %470 = vmatpush1.msra.mxu0 %v159
    %471 = vmatprep.subr.mxu0 %v162
    %472 = vmatpush1.msra.mxu0 %v161
    %473 = vmatprep.subr.mxu0 %v164
    %474 = vmatpush1.msra.mxu0 %v163
    %475 = vmatprep.subr.mxu0 %v166
    %476 = vmatpush1.msra.mxu0 %v165
    %477 = vmatprep.subr.mxu0 %v168
    %478 = vmatpush1.msra.mxu0 %v167
    %479 = vmatprep.subr.mxu0 %v170
    %480 = vmatpush1.msra.mxu0 %v169
    %481 = vmatprep.subr.mxu0 %v172
    %482 = vmatpush1.msra.mxu0 %v171
    %483 = vmatprep.subr.mxu0 %v174
    %484 = vmatpush1.msra.mxu0 %v173
    %485 = vmatprep.subr.mxu0 %v176
    %486 = vmatpush1.msra.mxu0 %v175
    %487 = vmatprep.subr.mxu0 %v178
    %488 = vmatpush1.msra.mxu0 %v177
    %489 = vmatprep.subr.mxu0 %v180
    %490 = vmatpush1.msra.mxu0 %v179
    %491 = vmatprep.subr.mxu0 %v182
    %492 = vmatpush1.msra.mxu0 %v181
    %493 = vmatprep.subr.mxu0 %v184
    %494 = vmatpush1.msra.mxu0 %v183
    %495 = vmatprep.subr.mxu0 %v186
    %496 = vmatpush1.msra.mxu0 %v185
    %497 = vmatprep.subr.mxu0 %v188
    %498 = vmatpush1.msra.mxu0 %v187
    %499 = vmatprep.subr.mxu0 %v190
    %500 = vmatpush1.msra.mxu0 %v189
    %501 = vmatprep.mubr.f32.mxu0 %v242
    %502 = vmatmul.mubr.f32.gmra.mrb[0].mxu0 %v241
    %v503 = vpop.f32.mrb[0].mxu0
    %v504 = vadd.f32 0.0, %v503
    %v505 = vpop.f32.mrb[0].mxu0
    %v506 = vadd.f32 0.0, %v505
    %507 = vmatprep.mubr.f32.mxu0 %v290
    %508 = vmatmul.mubr.f32.gmra.mrb[0].mxu0 %v289
    %v509 = vpop.f32.mrb[0].mxu0
    %v510 = vadd.f32 0.0, %v509
    %v511 = vpop.f32.mrb[0].mxu0
    %v512 = vadd.f32 0.0, %v511
    %513 = vdwg.mxu0
    %514 = vmatprep.subr.mxu0 %v293
    %515 = vmatpush1.msra.mxu0 %v292
    %516 = vmatprep.subr.mxu0 %v295
    %517 = vmatpush1.msra.mxu0 %v294
    %518 = vmatprep.subr.mxu0 %v297
    %519 = vmatpush1.msra.mxu0 %v296
    %520 = vmatprep.subr.mxu0 %v299
    %521 = vmatpush1.msra.mxu0 %v298
    %522 = vmatprep.subr.mxu0 %v301
    %523 = vmatpush1.msra.mxu0 %v300
    %524 = vmatprep.subr.mxu0 %v303
    %525 = vmatpush1.msra.mxu0 %v302
    %526 = vmatprep.subr.mxu0 %v305
    %527 = vmatpush1.msra.mxu0 %v304
    %528 = vmatprep.subr.mxu0 %v307
    %529 = vmatpush1.msra.mxu0 %v306
    %530 = vmatprep.subr.mxu0 %v309
    %531 = vmatpush1.msra.mxu0 %v308
    %532 = vmatprep.subr.mxu0 %v311
    %533 = vmatpush1.msra.mxu0 %v310
    %534 = vmatprep.subr.mxu0 %v313
    %535 = vmatpush1.msra.mxu0 %v312
    %536 = vmatprep.subr.mxu0 %v315
    %537 = vmatpush1.msra.mxu0 %v314
    %538 = vmatprep.subr.mxu0 %v317
    %539 = vmatpush1.msra.mxu0 %v316
    %540 = vmatprep.subr.mxu0 %v319
    %541 = vmatpush1.msra.mxu0 %v318
    %542 = vmatprep.subr.mxu0 %v321
    %543 = vmatpush1.msra.mxu0 %v320
    %544 = vmatprep.subr.mxu0 %v323
    %545 = vmatpush1.msra.mxu0 %v322
    %546 = vmatprep.subr.mxu0 %v325
    %547 = vmatpush1.msra.mxu0 %v324
    %548 = vmatprep.subr.mxu0 %v327
    %549 = vmatpush1.msra.mxu0 %v326
    %550 = vmatprep.subr.mxu0 %v329
    %551 = vmatpush1.msra.mxu0 %v328
    %552 = vmatprep.subr.mxu0 %v331
    %553 = vmatpush1.msra.mxu0 %v330
    %554 = vmatprep.subr.mxu0 %v333
    %555 = vmatpush1.msra.mxu0 %v332
    %556 = vmatprep.subr.mxu0 %v335
    %557 = vmatpush1.msra.mxu0 %v334
    %558 = vmatprep.subr.mxu0 %v337
    %559 = vmatpush1.msra.mxu0 %v336
    %560 = vmatprep.subr.mxu0 %v339
    %561 = vmatpush1.msra.mxu0 %v338
    %562 = vmatprep.subr.mxu0 %v341
    %563 = vmatpush1.msra.mxu0 %v340
    %564 = vmatprep.subr.mxu0 %v343
    %565 = vmatpush1.msra.mxu0 %v342
    %566 = vmatprep.subr.mxu0 %v345
    %567 = vmatpush1.msra.mxu0 %v344
    %568 = vmatprep.subr.mxu0 %v347
    %569 = vmatpush1.msra.mxu0 %v346
    %570 = vmatprep.subr.mxu0 %v349
    %571 = vmatpush1.msra.mxu0 %v348
    %572 = vmatprep.subr.mxu0 %v351
    %573 = vmatpush1.msra.mxu0 %v350
    %574 = vmatprep.subr.mxu0 %v353
    %575 = vmatpush1.msra.mxu0 %v352
    %576 = vmatprep.subr.mxu0 %v355
    %577 = vmatpush1.msra.mxu0 %v354
    %578 = vmatprep.mubr.f32.mxu0 %v357
    %579 = vmatmul.mubr.f32.gmra.mrb[0].mxu0 %v356
    %v580 = vpop.f32.mrb[0].mxu0
    %v581 = vadd.f32 0.0, %v580
    %v582 = vpop.f32.mrb[0].mxu0
    %v583 = vadd.f32 0.0, %v582
    %584 = vmatprep.mubr.f32.mxu0 %v359
    %585 = vmatmul.mubr.f32.gmra.mrb[0].mxu0 %v358
    %v586 = vpop.f32.mrb[0].mxu0
    %v587 = vadd.f32 0.0, %v586
    %v588 = vpop.f32.mrb[0].mxu0
    %v589 = vadd.f32 0.0, %v588
    %590 = vdwg.mxu0
    %v591 = vsub.f32 %v427, %v504
    %v592 = vsub.f32 %v429, %v506
    %v593 = vsub.f32 %v433, %v510
    %v594 = vsub.f32 %v435, %v512
    %v595 = vsub.f32 %v581, %v427
    %v596 = vsub.f32 %v583, %v429
    %v597 = vsub.f32 %v587, %v433
    %v598 = vsub.f32 %v589, %v435
    %v599 = vsub.f32 %v595, %v504
    %v600 = vsub.f32 %v596, %v506
    %v601 = vsub.f32 %v597, %v510
    %v602 = vsub.f32 %v598, %v512
    %v603 = vmul.f32 %v591, %v591
    %v604 = vmul.f32 %v592, %v592
    %v605 = vmul.f32 %v593, %v593
    %v606 = vmul.f32 %v594, %v594
    %v607 = vmul.f32 %v599, %v599
    %v608 = vmul.f32 %v600, %v600
    %v609 = vmul.f32 %v601, %v601
    %v610 = vmul.f32 %v602, %v602
    %v611 = vadd.f32 %v603, %v607
    %v612 = vadd.f32 %v604, %v608
    %v613 = vadd.f32 %v605, %v609
    %v614 = vadd.f32 %v606, %v610
    %v615 = vadd.f32 %v611, %v613
    %v616 = vadd.f32 %v612, %v614
    %617 = vst [vmem:[#allocation8] sm:$0xff] %v615
    %618 = vst [vmem:[#allocation8 + $0x8] sm:$0xff] %v616
    // Predicated region
    $region34: #{tpu_custom_call.1} parent=1 // pred_check
      _
    $region35: #{tpu_custom_call.1} parent=1 // pred_check_branch
      %620 = sbr.rel (0) target = $region37
    $region36: #{tpu_custom_call.1} parent=1 // pred_region
      %s622 = ssub.s32 256, 256
      %623 = vsyncadd [#allocation4], %s622
      %s625 = sshll.u32 [#allocation8], 4
      %s626 = int_to_ptr.vmem [resolvable:$true] %s625
      %628 = dma.vmem_to_hbm [thread:$0]  %s626, 256, %s5, [#allocation4]
    $region37: #{tpu_custom_call.1} parent=1 // pred_fallthru
      _
    // Predicated region
    $region38: #{tpu_custom_call.1} parent=1 // pred_check
      _
    $region39: #{tpu_custom_call.1} parent=1 // pred_check_branch
      %630 = sbr.rel (0) target = $region41
    $region40: #{tpu_custom_call.1} parent=1 // pred_region
      %631 = dma.done [#allocation4], 256
    $region41: #{tpu_custom_call.1} parent=1 // pred_fallthru
      _
    %632 = vsyncpa [#allocation3], 1
    %633 = vsyncpa [#allocation6], 1
    %634 = vsyncpa [#allocation4], 1

</llo_original>
